<compile_context>
chip_gen: v6e
topology: v6e:2x2x1
jax: 0.10.0
libtpu: 0.0.40
codegen_flags: <defaults>
</compile_context>

<pallas_src>
import functools

import jax
import jax.numpy as jnp
import numpy as np
from jax.experimental import pallas as pl
from jax.experimental.pallas import tpu as pltpu

# ----------------------------- configuration -------------------------------
DIM_HIDDEN = 32       # args.dim_hidden
NUM_FC = 3            # args.num_fc
NUM_ROUNDS = 4        # args.num_rounds
N_VARS = 4            # variables  -> 2*N_VARS literal nodes
N_CLAUSES = 8         # clause nodes
LITS_PER_CLAUSE = 3
NUM_NODES = 2 * N_VARS + N_CLAUSES   # 16


# ------------------------ shared compute helpers ---------------------------
def _unstack(a):
    """Split the leading axis into a Python list (works on arrays and Refs)."""
    return [a[i] for i in range(a.shape[0])]


def _mlp(x, w_list, b_list):
    """num_fc stacked Linear layers, ReLU between layers, none at the end."""
    n_layers = len(w_list)
    for li in range(n_layers):
        x = jnp.dot(x, w_list[li], preferred_element_type=jnp.float32) + b_list[li]
        if li != n_layers - 1:
            x = jnp.maximum(x, 0.0)
    return x


def _lstm_from_gates(g, c_prev, dim):
    """Pre-activation gates (rows, 4*dim) in i,f,g,o order -> (h_new, c_new)."""
    gi = g[:, 0 * dim:1 * dim]
    gf = g[:, 1 * dim:2 * dim]
    gg = g[:, 2 * dim:3 * dim]
    go = g[:, 3 * dim:4 * dim]
    c_new = jax.nn.sigmoid(gf) * c_prev + jax.nn.sigmoid(gi) * jnp.tanh(gg)
    h_new = jax.nn.sigmoid(go) * jnp.tanh(c_new)
    return h_new, c_new


# ------------------------------ Pallas kernel -------------------------------
def _neurosat_kernel(h0_ref, afwd_ref, abwd_ref,
                     lmsg_w_ref, lmsg_b_ref, cmsg_w_ref, cmsg_b_ref,
                     cu_wih_ref, cu_whh_ref, cu_b_ref,
                     lu_wim_ref, lu_wnh_ref, lu_b_ref,
                     hout_ref, *, num_rounds):
    dim = hout_ref.shape[-1]
    n_lits = afwd_ref.shape[-1]
    n_vars = n_lits // 2
    n_cls = hout_ref.shape[0] - n_lits

    # --- hoist every loop-invariant load / unstack / broadcast out of the
    # --- round loop (fori_loop bodies are not CSE'd across iterations).
    afwd = afwd_ref[...]                       # (n_cls, n_lits)
    abwd = abwd_ref[...]                       # (n_lits, n_cls)
    lmsg_w = _unstack(lmsg_w_ref)
    cmsg_w = _unstack(cmsg_w_ref)
    lmsg_b = [jnp.broadcast_to(lmsg_b_ref[i], (n_lits, dim))
              for i in range(lmsg_b_ref.shape[0])]
    cmsg_b = [jnp.broadcast_to(cmsg_b_ref[i], (n_cls, dim))
              for i in range(cmsg_b_ref.shape[0])]
    cu_wih = cu_wih_ref[...]                   # (dim, 4*dim)
    cu_whh = cu_whh_ref[...]                   # (dim, 4*dim)
    cu_b = jnp.broadcast_to(cu_b_ref[...], (n_cls, 4 * dim))
    lu_wim = lu_wim_ref[...]                   # (dim, 4*dim)   message half
    lu_wnh = lu_wnh_ref[...]                   # (dim, 8*dim)   [W_in | W_hh]
    lu_b = jnp.broadcast_to(lu_b_ref[...], (n_lits, 4 * dim))

    h0 = h0_ref[...]
    h_lit0 = h0[:n_lits, :]
    h_cls0 = h0[n_lits:, :]

    def round_body(_, carry):
        h_lit, c_lit, h_cls, c_cls = carry

        # ---- clause update: msg_c = A_fwd @ L_msg(h_lit), C_update LSTM ----
        msg_c = jnp.dot(afwd, _mlp(h_lit, lmsg_w, lmsg_b),
                        preferred_element_type=jnp.float32)
        g_c = (cu_b
               + jnp.dot(msg_c, cu_wih, preferred_element_type=jnp.float32)
               + jnp.dot(h_cls, cu_whh, preferred_element_type=jnp.float32))
        h_cls, c_cls = _lstm_from_gates(g_c, c_cls, dim)

        # ---- literal update: msg_l = A_bwd @ C_msg(h_cls), flip, L_update --
        msg_l = jnp.dot(abwd, _mlp(h_cls, cmsg_w, cmsg_b),
                        preferred_element_type=jnp.float32)
        # One fused (dim, 8*dim) matmul covers both the negated-literal input
        # term and the recurrent term.  Literal negation is a row permutation
        # P with (P h) @ W == P (h @ W), so roll the W_in half of the result
        # (sublane swap of the VAR / NEGVAR halves; XLU data movement only).
        g_nh = jnp.dot(h_lit, lu_wnh, preferred_element_type=jnp.float32)
        g_neg = jnp.roll(g_nh[:, :4 * dim], shift=n_vars, axis=0)
        g_l = (lu_b + g_neg + g_nh[:, 4 * dim:]
               + jnp.dot(msg_l, lu_wim, preferred_element_type=jnp.float32))
        h_lit, c_lit = _lstm_from_gates(g_l, c_lit, dim)

        return h_lit, c_lit, h_cls, c_cls

    init = (h_lit0, jnp.zeros_like(h_lit0), h_cls0, jnp.zeros_like(h_cls0))
    h_lit, _, h_cls, _ = jax.lax.fori_loop(0, num_rounds, round_body, init)

    # disjoint row-block stores (no mask selects)
    hout_ref[:n_lits, :] = h_lit
    hout_ref[n_lits:, :] = h_cls


def neurosat_pallas(kernel_args, num_rounds):
    vmem = lambda: pl.BlockSpec(memory_space=pltpu.MemorySpace.VMEM)
    fn = pl.pallas_call(
        functools.partial(_neurosat_kernel, num_rounds=num_rounds),
        out_shape=jax.ShapeDtypeStruct(kernel_args[0].shape, jnp.float32),
        in_specs=[vmem() for _ in kernel_args],
        out_specs=vmem(),
    )
    return fn(*kernel_args)


# --------------------------- pure-JAX reference -----------------------------
# Faithful to the PyTorch index_select / scatter formulation (sparse edges),
# using the *unfused* (4, D, D) LSTM weights so the test also validates the
# fused-gate / fused [W_in | W_hh] packing done for the kernel.
def _lstm_cell_ref(x_list, wih_list, h_prev, c_prev, whh, b):
    gates = []
    for k in range(4):
        g = b[k]
        for x, wih in zip(x_list, wih_list):
            g = g + jnp.dot(x, wih[k], preferred_element_type=jnp.float32)
        g = g + jnp.dot(h_prev, whh[k], preferred_element_type=jnp.float32)
        gates.append(g)
    gi, gf, gg, go = gates
    c_new = jax.nn.sigmoid(gf) * c_prev + jax.nn.sigmoid(gi) * jnp.tanh(gg)
    h_new = jax.nn.sigmoid(go) * jnp.tanh(c_new)
    return h_new, c_new


def reference_forward(h0, edge_src, edge_dst, c_idx, l_idx, flip_idx,
                      params, num_rounds):
    (lmsg_w, lmsg_b, cmsg_w, cmsg_b,
     cu_wih, cu_whh, cu_b, lu_wim, lu_win, lu_whh, lu_b) = params
    h = h0
    c = jnp.zeros_like(h0)
    for _ in range(num_rounds):
        x = _mlp(h, _unstack(lmsg_w), _unstack(lmsg_b))
        msg = jnp.zeros_like(h).at[edge_dst].add(x[edge_src])
        hc, cc = _lstm_cell_ref([msg[c_idx]], [cu_wih], h[c_idx], c[c_idx],
                                cu_whh, cu_b)
        h = h.at[c_idx].set(hc)
        c = c.at[c_idx].set(cc)
        x = _mlp(h, _unstack(cmsg_w), _unstack(cmsg_b))
        msgb = jnp.zeros_like(h).at[edge_src].add(x[edge_dst])
        l_neg = h[flip_idx]
        hl, cl = _lstm_cell_ref([msgb[l_idx], l_neg], [lu_wim, lu_win],
                                h[l_idx], c[l_idx], lu_whh, lu_b)
        h = h.at[l_idx].set(hl)
        c = c.at[l_idx].set(cl)
    return h


# ------------------------- host-side weight packing --------------------------
def _fuse_gates(w):   # (4, din, dout) -> (din, 4*dout), gate order i,f,g,o
    return jnp.concatenate([w[k] for k in range(4)], axis=1)


def _fuse_bias(b):    # (4, 1, dout) -> (1, 4*dout)
    return jnp.concatenate([b[k] for k in range(4)], axis=1)


# --------------------------------- main --------------------------------------
if __name__ == "__main__":
    D, N = DIM_HIDDEN, NUM_NODES
    n_lits = 2 * N_VARS
    key = jax.random.PRNGKey(0)
    keys = jax.random.split(key, 16)

    def nrm(k, shape, scale=0.1):
        return scale * jax.random.normal(k, shape, dtype=jnp.float32)

    # --- deterministic synthetic parameters (shapes from __init__) ----------
    lmsg_w = nrm(keys[0], (NUM_FC, D, D));  lmsg_b = nrm(keys[1], (NUM_FC, 1, D))
    cmsg_w = nrm(keys[2], (NUM_FC, D, D));  cmsg_b = nrm(keys[3], (NUM_FC, 1, D))
    cu_wih = nrm(keys[4], (4, D, D))        # C_update: LSTM(D -> D)
    cu_whh = nrm(keys[5], (4, D, D))
    cu_b   = nrm(keys[6], (4, 1, D))        # b_ih + b_hh folded together
    lu_wim = nrm(keys[7], (4, D, D))        # L_update: LSTM(2D -> D), msg half
    lu_win = nrm(keys[8], (4, D, D))        #                          neg half
    lu_whh = nrm(keys[9], (4, D, D))
    lu_b   = nrm(keys[10], (4, 1, D))
    l_init_w = nrm(keys[11], (D,)); l_init_b = nrm(keys[12], (D,))  # Linear(1,D)
    c_init_w = nrm(keys[13], (D,)); c_init_b = nrm(keys[14], (D,))  # Linear(1,D)

    # --- deterministic synthetic CNF graph ----------------------------------
    # nodes: [0, N_VARS) VAR, [N_VARS, 2*N_VARS) NEGVAR, rest CLAUSE
    gate_type = np.array([0] * N_VARS + [1] * N_VARS + [2] * N_CLAUSES,
                         dtype=np.int32)
    edge_src = jax.random.randint(keys[15], (N_CLAUSES * LITS_PER_CLAUSE,),
                                  0, n_lits)                          # literals
    edge_dst = jnp.repeat(jnp.arange(n_lits, N), LITS_PER_CLAUSE)     # clauses

    l_mask_col = jnp.asarray((gate_type <= 1), jnp.float32)[:, None]  # (N,1)
    c_mask_col = jnp.asarray((gate_type == 2), jnp.float32)[:, None]

    # h_init = L_init(1)*l_mask + C_init(1)*c_mask   (plain-JAX glue)
    l_vec = l_init_w * 1.0 + l_init_b
    c_vec = c_init_w * 1.0 + c_init_b
    h0 = l_mask_col * l_vec[None, :] + c_mask_col * c_vec[None, :]    # (N, D)

    # compact dense aggregation operators (glue; replaces edge gather/scatter)
    a_fwd = (jnp.zeros((N_CLAUSES, n_lits), jnp.float32)
             .at[edge_dst - n_lits, edge_src].add(1.0))               # (C, 2V)
    a_bwd = a_fwd.T                                                   # (2V, C)

    # fused LSTM gate packing: (4,D,D)/(4,1,D) -> (D,4D)/(1,4D), 4D == 128.
    # L_update additionally packs [W_in | W_hh] -> (D, 8D) so the negated-
    # literal and recurrent terms are one MXU matmul in the kernel.
    cu_wih_f = _fuse_gates(cu_wih); cu_whh_f = _fuse_gates(cu_whh)
    cu_b_f = _fuse_bias(cu_b)
    lu_wim_f = _fuse_gates(lu_wim)
    lu_wnh_f = jnp.concatenate([_fuse_gates(lu_win), _fuse_gates(lu_whh)],
                               axis=1)                                # (D, 8D)
    lu_b_f = _fuse_bias(lu_b)

    kernel_args = [h0, a_fwd, a_bwd,
                   lmsg_w, lmsg_b, cmsg_w, cmsg_b,
                   cu_wih_f, cu_whh_f, cu_b_f,
                   lu_wim_f, lu_wnh_f, lu_b_f]

    node_embedding = neurosat_pallas(kernel_args, NUM_ROUNDS)
    node_embedding = jax.block_until_ready(node_embedding)

    # cross-check against the index_select / scatter (PyTorch-style) reference
    c_idx = jnp.arange(n_lits, N)
    l_idx = jnp.arange(0, n_lits)
    lit = jnp.arange(n_lits)
    flip_idx = (lit + N_VARS) % n_lits
    params = (lmsg_w, lmsg_b, cmsg_w, cmsg_b,
              cu_wih, cu_whh, cu_b, lu_wim, lu_win, lu_whh, lu_b)
    ref = reference_forward(h0, edge_src, edge_dst, c_idx, l_idx, flip_idx,
                            params, NUM_ROUNDS)
    ref = jax.block_until_ready(ref)

    assert node_embedding.shape == (N, D)
    # Both kernel and reference run at DEFAULT matmul precision (single bf16
    # MXU pass); divergence comes only from dense-vs-scatter aggregation
    # ordering / gate-fusion add order and stays well inside this tolerance.
    np.testing.assert_allclose(np.asarray(node_embedding), np.asarray(ref),
                               atol=5e-3, rtol=5e-3)
    print("KERNEL_OK")
</pallas_src>

<mosaic_0001>
module attributes {stable_mosaic.version = 11 : i64} {
  func.func @_neurosat_kernel(%arg0: memref<16x32xf32, #tpu.memory_space<vmem>>, %arg1: memref<8x8xf32, #tpu.memory_space<vmem>>, %arg2: memref<8x8xf32, #tpu.memory_space<vmem>>, %arg3: memref<3x32x32xf32, #tpu.memory_space<vmem>>, %arg4: memref<3x1x32xf32, #tpu.memory_space<vmem>>, %arg5: memref<3x32x32xf32, #tpu.memory_space<vmem>>, %arg6: memref<3x1x32xf32, #tpu.memory_space<vmem>>, %arg7: memref<32x128xf32, #tpu.memory_space<vmem>>, %arg8: memref<32x128xf32, #tpu.memory_space<vmem>>, %arg9: memref<1x128xf32, #tpu.memory_space<vmem>>, %arg10: memref<32x128xf32, #tpu.memory_space<vmem>>, %arg11: memref<32x256xf32, #tpu.memory_space<vmem>>, %arg12: memref<1x128xf32, #tpu.memory_space<vmem>>, %arg13: memref<16x32xf32, #tpu.memory_space<vmem>>) attributes {dimension_semantics = [], scalar_prefetch = 0 : i64, scratch_operands = 0 : i64, tpu.core_type = #tpu.core_type<tc>} {
    %c0 = arith.constant 0 : index
    %c0_0 = arith.constant 0 : index
    %0 = vector.load %arg1[%c0, %c0_0] : memref<8x8xf32, #tpu.memory_space<vmem>>, vector<8x8xf32>
    %c0_1 = arith.constant 0 : index
    %c0_2 = arith.constant 0 : index
    %1 = vector.load %arg2[%c0_1, %c0_2] : memref<8x8xf32, #tpu.memory_space<vmem>>, vector<8x8xf32>
    %c0_3 = arith.constant 0 : index
    %c0_4 = arith.constant 0 : index
    %c0_5 = arith.constant 0 : index
    %2 = vector.load %arg3[%c0_3, %c0_4, %c0_5] : memref<3x32x32xf32, #tpu.memory_space<vmem>>, vector<1x32x32xf32>
    %3 = vector.shape_cast %2 : vector<1x32x32xf32> to vector<32x32xf32>
    %c1 = arith.constant 1 : index
    %c0_6 = arith.constant 0 : index
    %c0_7 = arith.constant 0 : index
    %4 = vector.load %arg3[%c1, %c0_6, %c0_7] : memref<3x32x32xf32, #tpu.memory_space<vmem>>, vector<1x32x32xf32>
    %5 = vector.shape_cast %4 : vector<1x32x32xf32> to vector<32x32xf32>
    %c2 = arith.constant 2 : index
    %c0_8 = arith.constant 0 : index
    %c0_9 = arith.constant 0 : index
    %6 = vector.load %arg3[%c2, %c0_8, %c0_9] : memref<3x32x32xf32, #tpu.memory_space<vmem>>, vector<1x32x32xf32>
    %7 = vector.shape_cast %6 : vector<1x32x32xf32> to vector<32x32xf32>
    %c0_10 = arith.constant 0 : index
    %c0_11 = arith.constant 0 : index
    %c0_12 = arith.constant 0 : index
    %8 = vector.load %arg5[%c0_10, %c0_11, %c0_12] : memref<3x32x32xf32, #tpu.memory_space<vmem>>, vector<1x32x32xf32>
    %9 = vector.shape_cast %8 : vector<1x32x32xf32> to vector<32x32xf32>
    %c1_13 = arith.constant 1 : index
    %c0_14 = arith.constant 0 : index
    %c0_15 = arith.constant 0 : index
    %10 = vector.load %arg5[%c1_13, %c0_14, %c0_15] : memref<3x32x32xf32, #tpu.memory_space<vmem>>, vector<1x32x32xf32>
    %11 = vector.shape_cast %10 : vector<1x32x32xf32> to vector<32x32xf32>
    %c2_16 = arith.constant 2 : index
    %c0_17 = arith.constant 0 : index
    %c0_18 = arith.constant 0 : index
    %12 = vector.load %arg5[%c2_16, %c0_17, %c0_18] : memref<3x32x32xf32, #tpu.memory_space<vmem>>, vector<1x32x32xf32>
    %13 = vector.shape_cast %12 : vector<1x32x32xf32> to vector<32x32xf32>
    %c0_19 = arith.constant 0 : index
    %c0_20 = arith.constant 0 : index
    %c0_21 = arith.constant 0 : index
    %14 = vector.load %arg4[%c0_19, %c0_20, %c0_21] : memref<3x1x32xf32, #tpu.memory_space<vmem>>, vector<1x1x32xf32>
    %15 = vector.shape_cast %14 : vector<1x1x32xf32> to vector<1x32xf32>
    %16 = vector.shape_cast %15 : vector<1x32xf32> to vector<1x32xf32>
    %17 = vector.broadcast %16 : vector<1x32xf32> to vector<8x32xf32>
    %c1_22 = arith.constant 1 : index
    %c0_23 = arith.constant 0 : index
    %c0_24 = arith.constant 0 : index
    %18 = vector.load %arg4[%c1_22, %c0_23, %c0_24] : memref<3x1x32xf32, #tpu.memory_space<vmem>>, vector<1x1x32xf32>
    %19 = vector.shape_cast %18 : vector<1x1x32xf32> to vector<1x32xf32>
    %20 = vector.shape_cast %19 : vector<1x32xf32> to vector<1x32xf32>
    %21 = vector.broadcast %20 : vector<1x32xf32> to vector<8x32xf32>
    %c2_25 = arith.constant 2 : index
    %c0_26 = arith.constant 0 : index
    %c0_27 = arith.constant 0 : index
    %22 = vector.load %arg4[%c2_25, %c0_26, %c0_27] : memref<3x1x32xf32, #tpu.memory_space<vmem>>, vector<1x1x32xf32>
    %23 = vector.shape_cast %22 : vector<1x1x32xf32> to vector<1x32xf32>
    %24 = vector.shape_cast %23 : vector<1x32xf32> to vector<1x32xf32>
    %25 = vector.broadcast %24 : vector<1x32xf32> to vector<8x32xf32>
    %c0_28 = arith.constant 0 : index
    %c0_29 = arith.constant 0 : index
    %c0_30 = arith.constant 0 : index
    %26 = vector.load %arg6[%c0_28, %c0_29, %c0_30] : memref<3x1x32xf32, #tpu.memory_space<vmem>>, vector<1x1x32xf32>
    %27 = vector.shape_cast %26 : vector<1x1x32xf32> to vector<1x32xf32>
    %28 = vector.shape_cast %27 : vector<1x32xf32> to vector<1x32xf32>
    %29 = vector.broadcast %28 : vector<1x32xf32> to vector<8x32xf32>
    %c1_31 = arith.constant 1 : index
    %c0_32 = arith.constant 0 : index
    %c0_33 = arith.constant 0 : index
    %30 = vector.load %arg6[%c1_31, %c0_32, %c0_33] : memref<3x1x32xf32, #tpu.memory_space<vmem>>, vector<1x1x32xf32>
    %31 = vector.shape_cast %30 : vector<1x1x32xf32> to vector<1x32xf32>
    %32 = vector.shape_cast %31 : vector<1x32xf32> to vector<1x32xf32>
    %33 = vector.broadcast %32 : vector<1x32xf32> to vector<8x32xf32>
    %c2_34 = arith.constant 2 : index
    %c0_35 = arith.constant 0 : index
    %c0_36 = arith.constant 0 : index
    %34 = vector.load %arg6[%c2_34, %c0_35, %c0_36] : memref<3x1x32xf32, #tpu.memory_space<vmem>>, vector<1x1x32xf32>
    %35 = vector.shape_cast %34 : vector<1x1x32xf32> to vector<1x32xf32>
    %36 = vector.shape_cast %35 : vector<1x32xf32> to vector<1x32xf32>
    %37 = vector.broadcast %36 : vector<1x32xf32> to vector<8x32xf32>
    %c0_37 = arith.constant 0 : index
    %c0_38 = arith.constant 0 : index
    %38 = vector.load %arg7[%c0_37, %c0_38] : memref<32x128xf32, #tpu.memory_space<vmem>>, vector<32x128xf32>
    %c0_39 = arith.constant 0 : index
    %c0_40 = arith.constant 0 : index
    %39 = vector.load %arg8[%c0_39, %c0_40] : memref<32x128xf32, #tpu.memory_space<vmem>>, vector<32x128xf32>
    %c0_41 = arith.constant 0 : index
    %c0_42 = arith.constant 0 : index
    %40 = vector.load %arg9[%c0_41, %c0_42] : memref<1x128xf32, #tpu.memory_space<vmem>>, vector<1x128xf32>
    %41 = vector.shape_cast %40 : vector<1x128xf32> to vector<1x128xf32>
    %42 = vector.broadcast %41 : vector<1x128xf32> to vector<8x128xf32>
    %c0_43 = arith.constant 0 : index
    %c0_44 = arith.constant 0 : index
    %43 = vector.load %arg10[%c0_43, %c0_44] : memref<32x128xf32, #tpu.memory_space<vmem>>, vector<32x128xf32>
    %c0_45 = arith.constant 0 : index
    %c0_46 = arith.constant 0 : index
    %44 = vector.load %arg11[%c0_45, %c0_46] : memref<32x256xf32, #tpu.memory_space<vmem>>, vector<32x256xf32>
    %c0_47 = arith.constant 0 : index
    %c0_48 = arith.constant 0 : index
    %45 = vector.load %arg12[%c0_47, %c0_48] : memref<1x128xf32, #tpu.memory_space<vmem>>, vector<1x128xf32>
    %46 = vector.shape_cast %45 : vector<1x128xf32> to vector<1x128xf32>
    %47 = vector.broadcast %46 : vector<1x128xf32> to vector<8x128xf32>
    %c0_49 = arith.constant 0 : index
    %c0_50 = arith.constant 0 : index
    %48 = vector.load %arg0[%c0_49, %c0_50] : memref<16x32xf32, #tpu.memory_space<vmem>>, vector<16x32xf32>
    %49 = vector.extract_strided_slice %48 {offsets = [0, 0], sizes = [8, 32], strides = [1, 1]} : vector<16x32xf32> to vector<8x32xf32>
    %50 = vector.extract_strided_slice %48 {offsets = [8, 0], sizes = [8, 32], strides = [1, 1]} : vector<16x32xf32> to vector<8x32xf32>
    %cst = arith.constant 0.000000e+00 : f32
    %51 = vector.broadcast %cst : f32 to vector<8x32xf32>
    %cst_51 = arith.constant 0.000000e+00 : f32
    %52 = vector.broadcast %cst_51 : f32 to vector<8x32xf32>
    %c0_i32 = arith.constant 0 : i32
    %c4_i32 = arith.constant 4 : i32
    %53 = arith.addi %c0_i32, %c4_i32 : i32
    %c1_i32 = arith.constant 1 : i32
    %54:4 = scf.for %arg14 = %c0_i32 to %53 step %c1_i32 iter_args(%arg15 = %49, %arg16 = %51, %arg17 = %50, %arg18 = %52) -> (vector<8x32xf32>, vector<8x32xf32>, vector<8x32xf32>, vector<8x32xf32>)  : i32 {
      %cst_55 = arith.constant dense<0.000000e+00> : vector<8x32xf32>
      %57 = tpu.matmul %arg15, %3, %cst_55 {dimension_numbers = #tpu.dot_dimension_numbers<[1], [0], [0], [1], [0, 0, 1, 1], [], []>} : vector<8x32xf32>, vector<32x32xf32>, vector<8x32xf32> -> vector<8x32xf32>
      %58 = arith.addf %57, %17 : vector<8x32xf32>
      %cst_56 = arith.constant 0.000000e+00 : f32
      %59 = vector.broadcast %cst_56 : f32 to vector<8x32xf32>
      %60 = arith.maximumf %58, %59 : vector<8x32xf32>
      %cst_57 = arith.constant dense<0.000000e+00> : vector<8x32xf32>
      %61 = tpu.matmul %60, %5, %cst_57 {dimension_numbers = #tpu.dot_dimension_numbers<[1], [0], [0], [1], [0, 0, 1, 1], [], []>} : vector<8x32xf32>, vector<32x32xf32>, vector<8x32xf32> -> vector<8x32xf32>
      %62 = arith.addf %61, %21 : vector<8x32xf32>
      %cst_58 = arith.constant 0.000000e+00 : f32
      %63 = vector.broadcast %cst_58 : f32 to vector<8x32xf32>
      %64 = arith.maximumf %62, %63 : vector<8x32xf32>
      %cst_59 = arith.constant dense<0.000000e+00> : vector<8x32xf32>
      %65 = tpu.matmul %64, %7, %cst_59 {dimension_numbers = #tpu.dot_dimension_numbers<[1], [0], [0], [1], [0, 0, 1, 1], [], []>} : vector<8x32xf32>, vector<32x32xf32>, vector<8x32xf32> -> vector<8x32xf32>
      %66 = arith.addf %65, %25 : vector<8x32xf32>
      %cst_60 = arith.constant dense<0.000000e+00> : vector<8x32xf32>
      %67 = tpu.matmul %0, %66, %cst_60 {dimension_numbers = #tpu.dot_dimension_numbers<[1], [0], [0], [1], [0, 0, 1, 1], [], []>} : vector<8x8xf32>, vector<8x32xf32>, vector<8x32xf32> -> vector<8x32xf32>
      %cst_61 = arith.constant dense<0.000000e+00> : vector<8x128xf32>
      %68 = tpu.matmul %67, %38, %cst_61 {dimension_numbers = #tpu.dot_dimension_numbers<[1], [0], [0], [1], [0, 0, 1, 1], [], []>} : vector<8x32xf32>, vector<32x128xf32>, vector<8x128xf32> -> vector<8x128xf32>
      %69 = arith.addf %42, %68 : vector<8x128xf32>
      %cst_62 = arith.constant dense<0.000000e+00> : vector<8x128xf32>
      %70 = tpu.matmul %arg17, %39, %cst_62 {dimension_numbers = #tpu.dot_dimension_numbers<[1], [0], [0], [1], [0, 0, 1, 1], [], []>} : vector<8x32xf32>, vector<32x128xf32>, vector<8x128xf32> -> vector<8x128xf32>
      %71 = arith.addf %69, %70 : vector<8x128xf32>
      %72 = vector.extract_strided_slice %71 {offsets = [0, 0], sizes = [8, 32], strides = [1, 1]} : vector<8x128xf32> to vector<8x32xf32>
      %73 = vector.extract_strided_slice %71 {offsets = [0, 32], sizes = [8, 32], strides = [1, 1]} : vector<8x128xf32> to vector<8x32xf32>
      %74 = vector.extract_strided_slice %71 {offsets = [0, 64], sizes = [8, 32], strides = [1, 1]} : vector<8x128xf32> to vector<8x32xf32>
      %75 = vector.extract_strided_slice %71 {offsets = [0, 96], sizes = [8, 32], strides = [1, 1]} : vector<8x128xf32> to vector<8x32xf32>
      %76 = arith.negf %73 : vector<8x32xf32>
      %77 = math.exp %76 : vector<8x32xf32>
      %cst_63 = arith.constant 1.000000e+00 : f32
      %78 = vector.broadcast %cst_63 : f32 to vector<8x32xf32>
      %79 = arith.addf %78, %77 : vector<8x32xf32>
      %80 = arith.divf %78, %79 : vector<8x32xf32>
      %81 = arith.mulf %80, %arg18 : vector<8x32xf32>
      %82 = arith.negf %72 : vector<8x32xf32>
      %83 = math.exp %82 : vector<8x32xf32>
      %cst_64 = arith.constant 1.000000e+00 : f32
      %84 = vector.broadcast %cst_64 : f32 to vector<8x32xf32>
      %85 = arith.addf %84, %83 : vector<8x32xf32>
      %86 = arith.divf %84, %85 : vector<8x32xf32>
      %87 = math.tanh %74 : vector<8x32xf32>
      %88 = arith.mulf %86, %87 : vector<8x32xf32>
      %89 = arith.addf %81, %88 : vector<8x32xf32>
      %90 = arith.negf %75 : vector<8x32xf32>
      %91 = math.exp %90 : vector<8x32xf32>
      %cst_65 = arith.constant 1.000000e+00 : f32
      %92 = vector.broadcast %cst_65 : f32 to vector<8x32xf32>
      %93 = arith.addf %92, %91 : vector<8x32xf32>
      %94 = arith.divf %92, %93 : vector<8x32xf32>
      %95 = math.tanh %89 : vector<8x32xf32>
      %96 = arith.mulf %94, %95 : vector<8x32xf32>
      %cst_66 = arith.constant dense<0.000000e+00> : vector<8x32xf32>
      %97 = tpu.matmul %96, %9, %cst_66 {dimension_numbers = #tpu.dot_dimension_numbers<[1], [0], [0], [1], [0, 0, 1, 1], [], []>} : vector<8x32xf32>, vector<32x32xf32>, vector<8x32xf32> -> vector<8x32xf32>
      %98 = arith.addf %97, %29 : vector<8x32xf32>
      %cst_67 = arith.constant 0.000000e+00 : f32
      %99 = vector.broadcast %cst_67 : f32 to vector<8x32xf32>
      %100 = arith.maximumf %98, %99 : vector<8x32xf32>
      %cst_68 = arith.constant dense<0.000000e+00> : vector<8x32xf32>
      %101 = tpu.matmul %100, %11, %cst_68 {dimension_numbers = #tpu.dot_dimension_numbers<[1], [0], [0], [1], [0, 0, 1, 1], [], []>} : vector<8x32xf32>, vector<32x32xf32>, vector<8x32xf32> -> vector<8x32xf32>
      %102 = arith.addf %101, %33 : vector<8x32xf32>
      %cst_69 = arith.constant 0.000000e+00 : f32
      %103 = vector.broadcast %cst_69 : f32 to vector<8x32xf32>
      %104 = arith.maximumf %102, %103 : vector<8x32xf32>
      %cst_70 = arith.constant dense<0.000000e+00> : vector<8x32xf32>
      %105 = tpu.matmul %104, %13, %cst_70 {dimension_numbers = #tpu.dot_dimension_numbers<[1], [0], [0], [1], [0, 0, 1, 1], [], []>} : vector<8x32xf32>, vector<32x32xf32>, vector<8x32xf32> -> vector<8x32xf32>
      %106 = arith.addf %105, %37 : vector<8x32xf32>
      %cst_71 = arith.constant dense<0.000000e+00> : vector<8x32xf32>
      %107 = tpu.matmul %1, %106, %cst_71 {dimension_numbers = #tpu.dot_dimension_numbers<[1], [0], [0], [1], [0, 0, 1, 1], [], []>} : vector<8x8xf32>, vector<8x32xf32>, vector<8x32xf32> -> vector<8x32xf32>
      %cst_72 = arith.constant dense<0.000000e+00> : vector<8x256xf32>
      %108 = tpu.matmul %arg15, %44, %cst_72 {dimension_numbers = #tpu.dot_dimension_numbers<[1], [0], [0], [1], [0, 0, 1, 1], [], []>} : vector<8x32xf32>, vector<32x256xf32>, vector<8x256xf32> -> vector<8x256xf32>
      %109 = vector.extract_strided_slice %108 {offsets = [0, 0], sizes = [8, 128], strides = [1, 1]} : vector<8x256xf32> to vector<8x128xf32>
      %110 = vector.extract_strided_slice %109 {offsets = [4, 0], sizes = [4, 128], strides = [1, 1]} : vector<8x128xf32> to vector<4x128xf32>
      %111 = vector.extract_strided_slice %109 {offsets = [0, 0], sizes = [4, 128], strides = [1, 1]} : vector<8x128xf32> to vector<4x128xf32>
      %112 = tpu.concatenate %110, %111 in 0 : vector<4x128xf32>, vector<4x128xf32> -> vector<8x128xf32>
      %113 = arith.addf %47, %112 : vector<8x128xf32>
      %114 = vector.extract_strided_slice %108 {offsets = [0, 128], sizes = [8, 128], strides = [1, 1]} : vector<8x256xf32> to vector<8x128xf32>
      %115 = arith.addf %113, %114 : vector<8x128xf32>
      %cst_73 = arith.constant dense<0.000000e+00> : vector<8x128xf32>
      %116 = tpu.matmul %107, %43, %cst_73 {dimension_numbers = #tpu.dot_dimension_numbers<[1], [0], [0], [1], [0, 0, 1, 1], [], []>} : vector<8x32xf32>, vector<32x128xf32>, vector<8x128xf32> -> vector<8x128xf32>
      %117 = arith.addf %115, %116 : vector<8x128xf32>
      %118 = vector.extract_strided_slice %117 {offsets = [0, 0], sizes = [8, 32], strides = [1, 1]} : vector<8x128xf32> to vector<8x32xf32>
      %119 = vector.extract_strided_slice %117 {offsets = [0, 32], sizes = [8, 32], strides = [1, 1]} : vector<8x128xf32> to vector<8x32xf32>
      %120 = vector.extract_strided_slice %117 {offsets = [0, 64], sizes = [8, 32], strides = [1, 1]} : vector<8x128xf32> to vector<8x32xf32>
      %121 = vector.extract_strided_slice %117 {offsets = [0, 96], sizes = [8, 32], strides = [1, 1]} : vector<8x128xf32> to vector<8x32xf32>
      %122 = arith.negf %119 : vector<8x32xf32>
      %123 = math.exp %122 : vector<8x32xf32>
      %cst_74 = arith.constant 1.000000e+00 : f32
      %124 = vector.broadcast %cst_74 : f32 to vector<8x32xf32>
      %125 = arith.addf %124, %123 : vector<8x32xf32>
      %126 = arith.divf %124, %125 : vector<8x32xf32>
      %127 = arith.mulf %126, %arg16 : vector<8x32xf32>
      %128 = arith.negf %118 : vector<8x32xf32>
      %129 = math.exp %128 : vector<8x32xf32>
      %cst_75 = arith.constant 1.000000e+00 : f32
      %130 = vector.broadcast %cst_75 : f32 to vector<8x32xf32>
      %131 = arith.addf %130, %129 : vector<8x32xf32>
      %132 = arith.divf %130, %131 : vector<8x32xf32>
      %133 = math.tanh %120 : vector<8x32xf32>
      %134 = arith.mulf %132, %133 : vector<8x32xf32>
      %135 = arith.addf %127, %134 : vector<8x32xf32>
      %136 = arith.negf %121 : vector<8x32xf32>
      %137 = math.exp %136 : vector<8x32xf32>
      %cst_76 = arith.constant 1.000000e+00 : f32
      %138 = vector.broadcast %cst_76 : f32 to vector<8x32xf32>
      %139 = arith.addf %138, %137 : vector<8x32xf32>
      %140 = arith.divf %138, %139 : vector<8x32xf32>
      %141 = math.tanh %135 : vector<8x32xf32>
      %142 = arith.mulf %140, %141 : vector<8x32xf32>
      scf.yield %142, %135, %96, %89 : vector<8x32xf32>, vector<8x32xf32>, vector<8x32xf32>, vector<8x32xf32>
    }
    %c0_52 = arith.constant 0 : index
    %c0_53 = arith.constant 0 : index
    %55 = vector.load %arg13[%c0_52, %c0_53] : memref<16x32xf32, #tpu.memory_space<vmem>>, vector<8x32xf32>
    tpu.vector_store %arg13[%c0_52, %c0_53], %54#0 {strides = array<i32>} : memref<16x32xf32, #tpu.memory_space<vmem>>, vector<8x32xf32>,
    %c8 = arith.constant 8 : index
    %c0_54 = arith.constant 0 : index
    %56 = vector.load %arg13[%c8, %c0_54] : memref<16x32xf32, #tpu.memory_space<vmem>>, vector<8x32xf32>
    tpu.vector_store %arg13[%c8, %c0_54], %54#2 {strides = array<i32>} : memref<16x32xf32, #tpu.memory_space<vmem>>, vector<8x32xf32>,
    return
  }
}

</mosaic_0001>

<llo_original>
// kernel: tpu_custom_call.1
$region0: #{tpu_custom_call.1}
  #allocation0 [shape = 'u32[]', space=smem, size = 0x4, offset = 0x4, fixed_abs, tag = 'smem constant byte address 0x4 - core index']
  #allocation1 [shape = 'u32[144,128]{1,0:T(1,128)}', space=vmem, size = 0x12000, scoped, tag = 'internal scratch']
  %s0 = inlined_call_operand.hbm [shape: f32[16,32], index: 0, kind: input, shape index: {}]
  %s1 = inlined_call_operand.hbm [shape: f32[8,8], index: 1, kind: input, shape index: {}]
  %s2 = inlined_call_operand.hbm [shape: f32[8,8], index: 2, kind: input, shape index: {}]
  %s3 = inlined_call_operand.hbm [shape: f32[3,32,32], index: 3, kind: input, shape index: {}]
  %s4 = inlined_call_operand.vmem [shape: f32[3,1,32], index: 4, kind: input, shape index: {}]
  %s5 = inlined_call_operand.hbm [shape: f32[3,32,32], index: 5, kind: input, shape index: {}]
  %s6 = inlined_call_operand.vmem [shape: f32[3,1,32], index: 6, kind: input, shape index: {}]
  %s7 = inlined_call_operand.hbm [shape: f32[32,128], index: 7, kind: input, shape index: {}]
  %s8 = inlined_call_operand.hbm [shape: f32[32,128], index: 8, kind: input, shape index: {}]
  %s9 = inlined_call_operand.vmem [shape: f32[1,128], index: 9, kind: input, shape index: {}]
  %s10 = inlined_call_operand.hbm [shape: f32[32,128], index: 10, kind: input, shape index: {}]
  %s11 = inlined_call_operand.hbm [shape: f32[32,256], index: 11, kind: input, shape index: {}]
  %s12 = inlined_call_operand.vmem [shape: f32[1,128], index: 12, kind: input, shape index: {}]
  %s13 = inlined_call_operand.hbm [shape: f32[16,32], index: 13, kind: output, shape index: {}]
  %s14 = sld [smem:[#allocation0]]
  $region105: #{tpu_custom_call.1} parent=0
    _
  %s16 = ssub.s32 1, %s14
  %s17 = scalar_select 0, %s16, %s14
  $region1: #{tpu_custom_call.1} parent=0
    #allocation2 [shape = 'u8[8192]{0}', space=vmem, size = 0x2000, scoped, tag = 'input window, operand 0, single buffered']
    #allocation3 [shape = 's32[1]{0}', space=sflag, size = 0x4, scoped, tag = 'scoped memory for tpu_custom_call.1']
    #allocation4 [shape = 's32[1]{0}', space=sflag, size = 0x4, scoped, tag = 'scoped memory for tpu_custom_call.1']
    #allocation5 [shape = 'u8[4096]{0}', space=vmem, size = 0x1000, scoped, tag = 'input window, operand 1, single buffered']
    #allocation6 [shape = 's32[1]{0}', space=sflag, size = 0x4, scoped, tag = 'scoped memory for tpu_custom_call.1']
    #allocation7 [shape = 'u8[4096]{0}', space=vmem, size = 0x1000, scoped, tag = 'input window, operand 2, single buffered']
    #allocation8 [shape = 'u8[49152]{0}', space=vmem, size = 0xc000, scoped, tag = 'input window, operand 3, single buffered']
    #allocation9 [shape = 's32[1]{0}', space=sflag, size = 0x4, scoped, tag = 'scoped memory for tpu_custom_call.1']
    #allocation10 [shape = 'u8[49152]{0}', space=vmem, size = 0xc000, scoped, tag = 'input window, operand 5, single buffered']
    #allocation11 [shape = 'u8[16384]{0}', space=vmem, size = 0x4000, scoped, tag = 'input window, operand 7, single buffered']
    #allocation12 [shape = 's32[1]{0}', space=sflag, size = 0x4, scoped, tag = 'scoped memory for tpu_custom_call.1']
    #allocation13 [shape = 'u8[16384]{0}', space=vmem, size = 0x4000, scoped, tag = 'input window, operand 8, single buffered']
    #allocation14 [shape = 'u8[16384]{0}', space=vmem, size = 0x4000, scoped, tag = 'input window, operand 10, single buffered']
    #allocation15 [shape = 's32[1]{0}', space=sflag, size = 0x4, scoped, tag = 'scoped memory for tpu_custom_call.1']
    #allocation16 [shape = 'u8[32768]{0}', space=vmem, size = 0x8000, scoped, tag = 'input window, operand 11, single buffered']
    #allocation17 [shape = 'u8[8192]{0}', space=vmem, size = 0x2000, scoped, tag = 'output window, operand 0, single buffered']
    %18 = vsyncpa [#allocation3], 0
    %19 = vsyncpa [#allocation6], 0
    %20 = vsyncpa [#allocation9], 0
    %21 = vsyncpa [#allocation12], 0
    %22 = vsyncpa [#allocation15], 0
    %23 = vsyncpa [#allocation4], 0
    // Predicated region
    $region2: #{tpu_custom_call.1} parent=1 // pred_check
      _
    $region3: #{tpu_custom_call.1} parent=1 // pred_check_branch
      %25 = sbr.rel (0) target = $region5
    $region4: #{tpu_custom_call.1} parent=1 // pred_region
      %s27 = ssub.s32 256, 256
      %28 = vsyncadd [#allocation3], %s27
      %s29 = sshll.u32 [#allocation2], 4
      %s30 = int_to_ptr.vmem [resolvable:$true] %s29
      %35 = dma.hbm_to_vmem [thread:$0]  %s0, 256, %s30, [#allocation3], 128, 128, 8
    $region5: #{tpu_custom_call.1} parent=1 // pred_fallthru
      _
    // Predicated region
    $region6: #{tpu_custom_call.1} parent=1 // pred_check
      _
    $region7: #{tpu_custom_call.1} parent=1 // pred_check_branch
      %37 = sbr.rel (0) target = $region9
    $region8: #{tpu_custom_call.1} parent=1 // pred_region
      %s39 = ssub.s32 128, 128
      %40 = vsyncadd [#allocation6], %s39
      %s42 = sshll.u32 [#allocation5], 4
      %s43 = int_to_ptr.vmem [resolvable:$true] %s42
      %45 = dma.hbm_to_vmem [thread:$0]  %s1, 128, %s43, [#allocation6]
    $region9: #{tpu_custom_call.1} parent=1 // pred_fallthru
      _
    // Predicated region
    $region10: #{tpu_custom_call.1} parent=1 // pred_check
      _
    $region11: #{tpu_custom_call.1} parent=1 // pred_check_branch
      %47 = sbr.rel (0) target = $region13
    $region12: #{tpu_custom_call.1} parent=1 // pred_region
      %s49 = ssub.s32 128, 128
      %50 = vsyncadd [#allocation6], %s49
      %s52 = sshll.u32 [#allocation7], 4
      %s53 = int_to_ptr.vmem [resolvable:$true] %s52
      %55 = dma.hbm_to_vmem [thread:$0]  %s2, 128, %s53, [#allocation6]
    $region13: #{tpu_custom_call.1} parent=1 // pred_fallthru
      _
    // Predicated region
    $region14: #{tpu_custom_call.1} parent=1 // pred_check
      _
    $region15: #{tpu_custom_call.1} parent=1 // pred_check_branch
      %57 = sbr.rel (0) target = $region17
    $region16: #{tpu_custom_call.1} parent=1 // pred_region
      %s59 = ssub.s32 1536, 1536
      %60 = vsyncadd [#allocation9], %s59
      %s61 = sshll.u32 [#allocation8], 4
      %s62 = int_to_ptr.vmem [resolvable:$true] %s61
      %67 = dma.hbm_to_vmem [thread:$0]  %s3, 1536, %s62, [#allocation9], 128, 128, 8
    $region17: #{tpu_custom_call.1} parent=1 // pred_fallthru
      _
    // Predicated region
    $region18: #{tpu_custom_call.1} parent=1 // pred_check
      _
    $region19: #{tpu_custom_call.1} parent=1 // pred_check_branch
      %69 = sbr.rel (0) target = $region21
    $region20: #{tpu_custom_call.1} parent=1 // pred_region
      _
    $region21: #{tpu_custom_call.1} parent=1 // pred_fallthru
      _
    // Predicated region
    $region22: #{tpu_custom_call.1} parent=1 // pred_check
      _
    $region23: #{tpu_custom_call.1} parent=1 // pred_check_branch
      %71 = sbr.rel (0) target = $region25
    $region24: #{tpu_custom_call.1} parent=1 // pred_region
      %s73 = ssub.s32 1536, 1536
      %74 = vsyncadd [#allocation9], %s73
      %s75 = sshll.u32 [#allocation10], 4
      %s76 = int_to_ptr.vmem [resolvable:$true] %s75
      %81 = dma.hbm_to_vmem [thread:$0]  %s5, 1536, %s76, [#allocation9], 128, 128, 8
    $region25: #{tpu_custom_call.1} parent=1 // pred_fallthru
      _
    // Predicated region
    $region26: #{tpu_custom_call.1} parent=1 // pred_check
      _
    $region27: #{tpu_custom_call.1} parent=1 // pred_check_branch
      %83 = sbr.rel (0) target = $region29
    $region28: #{tpu_custom_call.1} parent=1 // pred_region
      _
    $region29: #{tpu_custom_call.1} parent=1 // pred_fallthru
      _
    // Predicated region
    $region30: #{tpu_custom_call.1} parent=1 // pred_check
      _
    $region31: #{tpu_custom_call.1} parent=1 // pred_check_branch
      %85 = sbr.rel (0) target = $region33
    $region32: #{tpu_custom_call.1} parent=1 // pred_region
      %s87 = ssub.s32 512, 512
      %88 = vsyncadd [#allocation12], %s87
      %s89 = sshll.u32 [#allocation11], 4
      %s90 = int_to_ptr.vmem [resolvable:$true] %s89
      %95 = dma.hbm_to_vmem [thread:$0]  %s7, 512, %s90, [#allocation12], 128, 128, 8
    $region33: #{tpu_custom_call.1} parent=1 // pred_fallthru
      _
    // Predicated region
    $region34: #{tpu_custom_call.1} parent=1 // pred_check
      _
    $region35: #{tpu_custom_call.1} parent=1 // pred_check_branch
      %97 = sbr.rel (0) target = $region37
    $region36: #{tpu_custom_call.1} parent=1 // pred_region
      %s99 = ssub.s32 512, 512
      %100 = vsyncadd [#allocation12], %s99
      %s101 = sshll.u32 [#allocation13], 4
      %s102 = int_to_ptr.vmem [resolvable:$true] %s101
      %107 = dma.hbm_to_vmem [thread:$0]  %s8, 512, %s102, [#allocation12], 128, 128, 8
    $region37: #{tpu_custom_call.1} parent=1 // pred_fallthru
      _
    // Predicated region
    $region38: #{tpu_custom_call.1} parent=1 // pred_check
      _
    $region39: #{tpu_custom_call.1} parent=1 // pred_check_branch
      %109 = sbr.rel (0) target = $region41
    $region40: #{tpu_custom_call.1} parent=1 // pred_region
      _
    $region41: #{tpu_custom_call.1} parent=1 // pred_fallthru
      _
    // Predicated region
    $region42: #{tpu_custom_call.1} parent=1 // pred_check
      _
    $region43: #{tpu_custom_call.1} parent=1 // pred_check_branch
      %111 = sbr.rel (0) target = $region45
    $region44: #{tpu_custom_call.1} parent=1 // pred_region
      %s113 = ssub.s32 512, 512
      %114 = vsyncadd [#allocation15], %s113
      %s115 = sshll.u32 [#allocation14], 4
      %s116 = int_to_ptr.vmem [resolvable:$true] %s115
      %121 = dma.hbm_to_vmem [thread:$0]  %s10, 512, %s116, [#allocation15], 128, 128, 8
    $region45: #{tpu_custom_call.1} parent=1 // pred_fallthru
      _
    // Predicated region
    $region46: #{tpu_custom_call.1} parent=1 // pred_check
      _
    $region47: #{tpu_custom_call.1} parent=1 // pred_check_branch
      %123 = sbr.rel (0) target = $region49
    $region48: #{tpu_custom_call.1} parent=1 // pred_region
      %s125 = ssub.s32 1024, 1024
      %126 = vsyncadd [#allocation15], %s125
      %s127 = sshll.u32 [#allocation16], 4
      %s128 = int_to_ptr.vmem [resolvable:$true] %s127
      %133 = dma.hbm_to_vmem [thread:$0]  %s11, 1024, %s128, [#allocation15], 256, 256, 16
    $region49: #{tpu_custom_call.1} parent=1 // pred_fallthru
      _
    // Predicated region
    $region50: #{tpu_custom_call.1} parent=1 // pred_check
      _
    $region51: #{tpu_custom_call.1} parent=1 // pred_check_branch
      %135 = sbr.rel (0) target = $region53
    $region52: #{tpu_custom_call.1} parent=1 // pred_region
      _
    $region53: #{tpu_custom_call.1} parent=1 // pred_fallthru
      _
    // Predicated region
    $region54: #{tpu_custom_call.1} parent=1 // pred_check
      _
    $region55: #{tpu_custom_call.1} parent=1 // pred_check_branch
      %137 = sbr.rel (0) target = $region57
    $region56: #{tpu_custom_call.1} parent=1 // pred_region
      %138 = dma.done [#allocation3], 256
    $region57: #{tpu_custom_call.1} parent=1 // pred_fallthru
      _
    // Predicated region
    $region58: #{tpu_custom_call.1} parent=1 // pred_check
      _
    $region59: #{tpu_custom_call.1} parent=1 // pred_check_branch
      %140 = sbr.rel (0) target = $region61
    $region60: #{tpu_custom_call.1} parent=1 // pred_region
      %141 = dma.done [#allocation6], 128
    $region61: #{tpu_custom_call.1} parent=1 // pred_fallthru
      _
    // Predicated region
    $region62: #{tpu_custom_call.1} parent=1 // pred_check
      _
    $region63: #{tpu_custom_call.1} parent=1 // pred_check_branch
      %143 = sbr.rel (0) target = $region65
    $region64: #{tpu_custom_call.1} parent=1 // pred_region
      %144 = dma.done [#allocation6], 128
    $region65: #{tpu_custom_call.1} parent=1 // pred_fallthru
      _
    // Predicated region
    $region66: #{tpu_custom_call.1} parent=1 // pred_check
      _
    $region67: #{tpu_custom_call.1} parent=1 // pred_check_branch
      %146 = sbr.rel (0) target = $region69
    $region68: #{tpu_custom_call.1} parent=1 // pred_region
      %147 = dma.done [#allocation9], 1536
    $region69: #{tpu_custom_call.1} parent=1 // pred_fallthru
      _
    // Predicated region
    $region70: #{tpu_custom_call.1} parent=1 // pred_check
      _
    $region71: #{tpu_custom_call.1} parent=1 // pred_check_branch
      %149 = sbr.rel (0) target = $region73
    $region72: #{tpu_custom_call.1} parent=1 // pred_region
      %150 = dma.done [#allocation9], 1536
    $region73: #{tpu_custom_call.1} parent=1 // pred_fallthru
      _
    // Predicated region
    $region74: #{tpu_custom_call.1} parent=1 // pred_check
      _
    $region75: #{tpu_custom_call.1} parent=1 // pred_check_branch
      %152 = sbr.rel (0) target = $region77
    $region76: #{tpu_custom_call.1} parent=1 // pred_region
      %153 = dma.done [#allocation12], 512
    $region77: #{tpu_custom_call.1} parent=1 // pred_fallthru
      _
    // Predicated region
    $region78: #{tpu_custom_call.1} parent=1 // pred_check
      _
    $region79: #{tpu_custom_call.1} parent=1 // pred_check_branch
      %155 = sbr.rel (0) target = $region81
    $region80: #{tpu_custom_call.1} parent=1 // pred_region
      %156 = dma.done [#allocation12], 512
    $region81: #{tpu_custom_call.1} parent=1 // pred_fallthru
      _
    // Predicated region
    $region82: #{tpu_custom_call.1} parent=1 // pred_check
      _
    $region83: #{tpu_custom_call.1} parent=1 // pred_check_branch
      %158 = sbr.rel (0) target = $region85
    $region84: #{tpu_custom_call.1} parent=1 // pred_region
      %159 = dma.done [#allocation15], 512
    $region85: #{tpu_custom_call.1} parent=1 // pred_fallthru
      _
    // Predicated region
    $region86: #{tpu_custom_call.1} parent=1 // pred_check
      _
    $region87: #{tpu_custom_call.1} parent=1 // pred_check_branch
      %161 = sbr.rel (0) target = $region89
    $region88: #{tpu_custom_call.1} parent=1 // pred_region
      %162 = dma.done [#allocation15], 1024
    $region89: #{tpu_custom_call.1} parent=1 // pred_fallthru
      _
    %v163 = vld [vmem:[#allocation5] sm:$0xff]
    %v164 = vld [vmem:[#allocation7] sm:$0xff]
    %v165 = vld [vmem:[#allocation8] sm:$0xff]
    %v166 = vld [vmem:[#allocation8 + $0x8] sm:$0xff]
    %v167 = vld [vmem:[#allocation8 + $0x10] sm:$0xff]
    %v168 = vld [vmem:[#allocation8 + $0x18] sm:$0xff]
    %s169 = scalar_lea.vmem [#allocation8], 32
    %v170 = vld [vmem:[%s169] sm:$0xff]
    %v171 = vld [vmem:[%s169 + $0x8] sm:$0xff]
    %v172 = vld [vmem:[%s169 + $0x10] sm:$0xff]
    %v173 = vld [vmem:[%s169 + $0x18] sm:$0xff]
    %s174 = scalar_lea.vmem [#allocation8], 64
    %v175 = vld [vmem:[%s174] sm:$0xff]
    %v176 = vld [vmem:[%s174 + $0x8] sm:$0xff]
    %v177 = vld [vmem:[%s174 + $0x10] sm:$0xff]
    %v178 = vld [vmem:[%s174 + $0x18] sm:$0xff]
    %v179 = vld [vmem:[#allocation10] sm:$0xff]
    %v180 = vld [vmem:[#allocation10 + $0x8] sm:$0xff]
    %v181 = vld [vmem:[#allocation10 + $0x10] sm:$0xff]
    %v182 = vld [vmem:[#allocation10 + $0x18] sm:$0xff]
    %s183 = scalar_lea.vmem [#allocation10], 32
    %v184 = vld [vmem:[%s183] sm:$0xff]
    %v185 = vld [vmem:[%s183 + $0x8] sm:$0xff]
    %v186 = vld [vmem:[%s183 + $0x10] sm:$0xff]
    %v187 = vld [vmem:[%s183 + $0x18] sm:$0xff]
    %s188 = scalar_lea.vmem [#allocation10], 64
    %v189 = vld [vmem:[%s188] sm:$0xff]
    %v190 = vld [vmem:[%s188 + $0x8] sm:$0xff]
    %v191 = vld [vmem:[%s188 + $0x10] sm:$0xff]
    %v192 = vld [vmem:[%s188 + $0x18] sm:$0xff]
    %v193 = vld [vmem:[%s4] sm:$0x1]
    %v195 = vlaneseq
    %v196 = vshrl.u32 %v195, 7
    %v197 = vsub.s32 0, %v196
    %v198 = vrot.slane %v193, %v197
    %s200 = scalar_lea.vmem %s4, 1
    %v201 = vld [vmem:[%s200] sm:$0x1]
    %v203 = vlaneseq
    %v204 = vshrl.u32 %v203, 7
    %v205 = vsub.s32 0, %v204
    %v206 = vrot.slane %v201, %v205
    %s208 = scalar_lea.vmem %s4, 2
    %v209 = vld [vmem:[%s208] sm:$0x1]
    %v211 = vlaneseq
    %v212 = vshrl.u32 %v211, 7
    %v213 = vsub.s32 0, %v212
    %v214 = vrot.slane %v209, %v213
    %v216 = vld [vmem:[%s6] sm:$0x1]
    %v218 = vlaneseq
    %v219 = vshrl.u32 %v218, 7
    %v220 = vsub.s32 0, %v219
    %v221 = vrot.slane %v216, %v220
    %s223 = scalar_lea.vmem %s6, 1
    %v224 = vld [vmem:[%s223] sm:$0x1]
    %v226 = vlaneseq
    %v227 = vshrl.u32 %v226, 7
    %v228 = vsub.s32 0, %v227
    %v229 = vrot.slane %v224, %v228
    %s231 = scalar_lea.vmem %s6, 2
    %v232 = vld [vmem:[%s231] sm:$0x1]
    %v234 = vlaneseq
    %v235 = vshrl.u32 %v234, 7
    %v236 = vsub.s32 0, %v235
    %v237 = vrot.slane %v232, %v236
    %v239 = vld [vmem:[#allocation11] sm:$0xff]
    %v240 = vld [vmem:[#allocation11 + $0x8] sm:$0xff]
    %v241 = vld [vmem:[#allocation11 + $0x10] sm:$0xff]
    %v242 = vld [vmem:[#allocation11 + $0x18] sm:$0xff]
    %v243 = vld [vmem:[#allocation13] sm:$0xff]
    %v244 = vld [vmem:[#allocation13 + $0x8] sm:$0xff]
    %v245 = vld [vmem:[#allocation13 + $0x10] sm:$0xff]
    %v246 = vld [vmem:[#allocation13 + $0x18] sm:$0xff]
    %v247 = vld [vmem:[%s9] sm:$0x1]
    %v249 = vlaneseq
    %v250 = vshrl.u32 %v249, 7
    %v251 = vsub.s32 0, %v250
    %v252 = vrot.slane %v247, %v251
    %v254 = vld [vmem:[#allocation14] sm:$0xff]
    %v255 = vld [vmem:[#allocation14 + $0x8] sm:$0xff]
    %v256 = vld [vmem:[#allocation14 + $0x10] sm:$0xff]
    %v257 = vld [vmem:[#allocation14 + $0x18] sm:$0xff]
    %v258 = vld [vmem:[#allocation16] sm:$0xff]
    %v259 = vld [vmem:[#allocation16 + $0x8] sm:$0xff]
    %v260 = vld [vmem:[#allocation16 + $0x10] sm:$0xff]
    %v261 = vld [vmem:[#allocation16 + $0x18] sm:$0xff]
    %v262 = vld [vmem:[#allocation16 + $0x20] sm:$0xff]
    %v263 = vld [vmem:[#allocation16 + $0x28] sm:$0xff]
    %v264 = vld [vmem:[#allocation16 + $0x30] sm:$0xff]
    %v265 = vld [vmem:[#allocation16 + $0x38] sm:$0xff]
    %v266 = vld [vmem:[%s12] sm:$0x1]
    %v268 = vlaneseq
    %v269 = vshrl.u32 %v268, 7
    %v270 = vsub.s32 0, %v269
    %v271 = vrot.slane %v266, %v270
    %v273 = vld [vmem:[#allocation2] sm:$0xff]
    %v274 = vld [vmem:[#allocation2 + $0x8] sm:$0xff]
    loop: start=0, step=1, limit=4
    $region90: #{tpu_custom_call.1} parent=1 // loop_pre_header
      _
    $region91: #{tpu_custom_call.1} parent=1 // loop_header
      %s276 = sphi 0, %s280
      %p277 = scmp.ge.s32.totalorder %s276, 4
      %v281 = vphi %v273, %v1227
      %v282 = vphi 0.0, %v1218
      %v283 = vphi %v274, %v755
      %v284 = vphi 0.0, %v746
    $region92: #{tpu_custom_call.1} parent=1 // loop_header_branch
      %279 = sbr.rel (%p277) target = $region96
    $region93: #{tpu_custom_call.1} parent=1 // loop_body
      %vm285 = vcmask 261120
      %v287 = vsel %vm285, %v281, 0
      %289 = vmatprep.subr.mxu0 0.0
      %290 = vmatpush1.msra.mxu0 0.0
      %291 = vmatprep.subr.mxu0 0.0
      %292 = vmatpush1.msra.mxu0 0.0
      %293 = vmatprep.subr.mxu0 0.0
      %294 = vmatpush1.msra.mxu0 0.0
      %295 = vmatprep.subr.mxu0 0.0
      %296 = vmatpush1.msra.mxu0 0.0
      %297 = vmatprep.subr.mxu0 0.0
      %298 = vmatpush1.msra.mxu0 0.0
      %299 = vmatprep.subr.mxu0 0.0
      %300 = vmatpush1.msra.mxu0 0.0
      %301 = vmatprep.subr.mxu0 0.0
      %302 = vmatpush1.msra.mxu0 0.0
      %303 = vmatprep.subr.mxu0 0.0
      %304 = vmatpush1.msra.mxu0 0.0
      %305 = vmatprep.subr.mxu0 0.0
      %306 = vmatpush1.msra.mxu0 0.0
      %307 = vmatprep.subr.mxu0 0.0
      %308 = vmatpush1.msra.mxu0 0.0
      %309 = vmatprep.subr.mxu0 0.0
      %310 = vmatpush1.msra.mxu0 0.0
      %311 = vmatprep.subr.mxu0 0.0
      %312 = vmatpush1.msra.mxu0 0.0
      %313 = vmatprep.subr.mxu0 0.0
      %314 = vmatpush1.msra.mxu0 %v168
      %315 = vmatprep.subr.mxu0 0.0
      %316 = vmatpush1.msra.mxu0 %v167
      %317 = vmatprep.subr.mxu0 0.0
      %318 = vmatpush1.msra.mxu0 %v166
      %319 = vmatprep.subr.mxu0 0.0
      %320 = vmatpush1.msra.mxu0 %v165
      %321 = vmatprep.subr.mxu0 0.0
      %322 = vmatpush2.msra.mxu0 0.0
      %323 = vmatprep.subr.mxu0 0.0
      %324 = vmatpush2.msra.mxu0 0.0
      %325 = vmatprep.subr.mxu0 0.0
      %326 = vmatpush2.msra.mxu0 0.0
      %327 = vmatprep.subr.mxu0 0.0
      %328 = vmatpush2.msra.mxu0 0.0
      %329 = vmatprep.subr.mxu0 0.0
      %330 = vmatpush2.msra.mxu0 0.0
      %331 = vmatprep.subr.mxu0 0.0
      %332 = vmatpush2.msra.mxu0 0.0
      %333 = vmatprep.subr.mxu0 0.0
      %334 = vmatpush2.msra.mxu0 0.0
      %335 = vmatprep.subr.mxu0 0.0
      %336 = vmatpush2.msra.mxu0 0.0
      %337 = vmatprep.subr.mxu0 0.0
      %338 = vmatpush2.msra.mxu0 0.0
      %339 = vmatprep.subr.mxu0 0.0
      %340 = vmatpush2.msra.mxu0 0.0
      %341 = vmatprep.subr.mxu0 0.0
      %342 = vmatpush2.msra.mxu0 0.0
      %343 = vmatprep.subr.mxu0 0.0
      %344 = vmatpush2.msra.mxu0 0.0
      %345 = vmatprep.subr.mxu0 0.0
      %346 = vmatpush2.msra.mxu0 0.0
      %347 = vmatprep.subr.mxu0 0.0
      %348 = vmatpush2.msra.mxu0 0.0
      %349 = vmatprep.subr.mxu0 0.0
      %350 = vmatpush2.msra.mxu0 0.0
      %351 = vmatprep.subr.mxu0 0.0
      %352 = vmatpush2.msra.mxu0 0.0
      %353 = vmatprep.mubr.f32.mxu0 0.0
      %354 = vmatmul.mubr.f32.gmra.mxu0 %v287
      %v355 = vpop.f32.mrf.mxu0
      %v356 = vadd.f32 %v198, %v355
      %v357 = vpop.f32.mrf.mxu0
      %358 = vdwg.mxu0
      %v359 = vmax.f32 %v356, 0.0
      %v361 = vsel %vm285, %v359, 0
      %363 = vmatprep.subr.mxu0 0.0
      %364 = vmatpush1.msra.mxu0 0.0
      %365 = vmatprep.subr.mxu0 0.0
      %366 = vmatpush1.msra.mxu0 0.0
      %367 = vmatprep.subr.mxu0 0.0
      %368 = vmatpush1.msra.mxu0 0.0
      %369 = vmatprep.subr.mxu0 0.0
      %370 = vmatpush1.msra.mxu0 0.0
      %371 = vmatprep.subr.mxu0 0.0
      %372 = vmatpush1.msra.mxu0 0.0
      %373 = vmatprep.subr.mxu0 0.0
      %374 = vmatpush1.msra.mxu0 0.0
      %375 = vmatprep.subr.mxu0 0.0
      %376 = vmatpush1.msra.mxu0 0.0
      %377 = vmatprep.subr.mxu0 0.0
      %378 = vmatpush1.msra.mxu0 0.0
      %379 = vmatprep.subr.mxu0 0.0
      %380 = vmatpush1.msra.mxu0 0.0
      %381 = vmatprep.subr.mxu0 0.0
      %382 = vmatpush1.msra.mxu0 0.0
      %383 = vmatprep.subr.mxu0 0.0
      %384 = vmatpush1.msra.mxu0 0.0
      %385 = vmatprep.subr.mxu0 0.0
      %386 = vmatpush1.msra.mxu0 0.0
      %387 = vmatprep.subr.mxu0 0.0
      %388 = vmatpush1.msra.mxu0 %v173
      %389 = vmatprep.subr.mxu0 0.0
      %390 = vmatpush1.msra.mxu0 %v172
      %391 = vmatprep.subr.mxu0 0.0
      %392 = vmatpush1.msra.mxu0 %v171
      %393 = vmatprep.subr.mxu0 0.0
      %394 = vmatpush1.msra.mxu0 %v170
      %395 = vmatprep.subr.mxu0 0.0
      %396 = vmatpush2.msra.mxu0 0.0
      %397 = vmatprep.subr.mxu0 0.0
      %398 = vmatpush2.msra.mxu0 0.0
      %399 = vmatprep.subr.mxu0 0.0
      %400 = vmatpush2.msra.mxu0 0.0
      %401 = vmatprep.subr.mxu0 0.0
      %402 = vmatpush2.msra.mxu0 0.0
      %403 = vmatprep.subr.mxu0 0.0
      %404 = vmatpush2.msra.mxu0 0.0
      %405 = vmatprep.subr.mxu0 0.0
      %406 = vmatpush2.msra.mxu0 0.0
      %407 = vmatprep.subr.mxu0 0.0
      %408 = vmatpush2.msra.mxu0 0.0
      %409 = vmatprep.subr.mxu0 0.0
      %410 = vmatpush2.msra.mxu0 0.0
      %411 = vmatprep.subr.mxu0 0.0
      %412 = vmatpush2.msra.mxu0 0.0
      %413 = vmatprep.subr.mxu0 0.0
      %414 = vmatpush2.msra.mxu0 0.0
      %415 = vmatprep.subr.mxu0 0.0
      %416 = vmatpush2.msra.mxu0 0.0
      %417 = vmatprep.subr.mxu0 0.0
      %418 = vmatpush2.msra.mxu0 0.0
      %419 = vmatprep.subr.mxu0 0.0
      %420 = vmatpush2.msra.mxu0 0.0
      %421 = vmatprep.subr.mxu0 0.0
      %422 = vmatpush2.msra.mxu0 0.0
      %423 = vmatprep.subr.mxu0 0.0
      %424 = vmatpush2.msra.mxu0 0.0
      %425 = vmatprep.subr.mxu0 0.0
      %426 = vmatpush2.msra.mxu0 0.0
      %427 = vmatprep.mubr.f32.mxu0 0.0
      %428 = vmatmul.mubr.f32.gmra.mxu0 %v361
      %v429 = vpop.f32.mrf.mxu0
      %v430 = vadd.f32 %v206, %v429
      %v431 = vpop.f32.mrf.mxu0
      %432 = vdwg.mxu0
      %v433 = vmax.f32 %v430, 0.0
      %v435 = vsel %vm285, %v433, 0
      %437 = vmatprep.subr.mxu0 0.0
      %438 = vmatpush1.msra.mxu0 0.0
      %439 = vmatprep.subr.mxu0 0.0
      %440 = vmatpush1.msra.mxu0 0.0
      %441 = vmatprep.subr.mxu0 0.0
      %442 = vmatpush1.msra.mxu0 0.0
      %443 = vmatprep.subr.mxu0 0.0
      %444 = vmatpush1.msra.mxu0 0.0
      %445 = vmatprep.subr.mxu0 0.0
      %446 = vmatpush1.msra.mxu0 0.0
      %447 = vmatprep.subr.mxu0 0.0
      %448 = vmatpush1.msra.mxu0 0.0
      %449 = vmatprep.subr.mxu0 0.0
      %450 = vmatpush1.msra.mxu0 0.0
      %451 = vmatprep.subr.mxu0 0.0
      %452 = vmatpush1.msra.mxu0 0.0
      %453 = vmatprep.subr.mxu0 0.0
      %454 = vmatpush1.msra.mxu0 0.0
      %455 = vmatprep.subr.mxu0 0.0
      %456 = vmatpush1.msra.mxu0 0.0
      %457 = vmatprep.subr.mxu0 0.0
      %458 = vmatpush1.msra.mxu0 0.0
      %459 = vmatprep.subr.mxu0 0.0
      %460 = vmatpush1.msra.mxu0 0.0
      %461 = vmatprep.subr.mxu0 0.0
      %462 = vmatpush1.msra.mxu0 %v178
      %463 = vmatprep.subr.mxu0 0.0
      %464 = vmatpush1.msra.mxu0 %v177
      %465 = vmatprep.subr.mxu0 0.0
      %466 = vmatpush1.msra.mxu0 %v176
      %467 = vmatprep.subr.mxu0 0.0
      %468 = vmatpush1.msra.mxu0 %v175
      %469 = vmatprep.subr.mxu0 0.0
      %470 = vmatpush2.msra.mxu0 0.0
      %471 = vmatprep.subr.mxu0 0.0
      %472 = vmatpush2.msra.mxu0 0.0
      %473 = vmatprep.subr.mxu0 0.0
      %474 = vmatpush2.msra.mxu0 0.0
      %475 = vmatprep.subr.mxu0 0.0
      %476 = vmatpush2.msra.mxu0 0.0
      %477 = vmatprep.subr.mxu0 0.0
      %478 = vmatpush2.msra.mxu0 0.0
      %479 = vmatprep.subr.mxu0 0.0
      %480 = vmatpush2.msra.mxu0 0.0
      %481 = vmatprep.subr.mxu0 0.0
      %482 = vmatpush2.msra.mxu0 0.0
      %483 = vmatprep.subr.mxu0 0.0
      %484 = vmatpush2.msra.mxu0 0.0
      %485 = vmatprep.subr.mxu0 0.0
      %486 = vmatpush2.msra.mxu0 0.0
      %487 = vmatprep.subr.mxu0 0.0
      %488 = vmatpush2.msra.mxu0 0.0
      %489 = vmatprep.subr.mxu0 0.0
      %490 = vmatpush2.msra.mxu0 0.0
      %491 = vmatprep.subr.mxu0 0.0
      %492 = vmatpush2.msra.mxu0 0.0
      %493 = vmatprep.subr.mxu0 0.0
      %494 = vmatpush2.msra.mxu0 0.0
      %495 = vmatprep.subr.mxu0 0.0
      %496 = vmatpush2.msra.mxu0 0.0
      %497 = vmatprep.subr.mxu0 0.0
      %498 = vmatpush2.msra.mxu0 0.0
      %499 = vmatprep.subr.mxu0 0.0
      %500 = vmatpush2.msra.mxu0 0.0
      %501 = vmatprep.mubr.f32.mxu0 0.0
      %502 = vmatmul.mubr.f32.gmra.mxu0 %v435
      %v503 = vpop.f32.mrf.mxu0
      %v504 = vadd.f32 %v214, %v503
      %v505 = vpop.f32.mrf.mxu0
      %506 = vdwg.mxu0
      %vm507 = vcmask 64512
      %v509 = vsel %vm507, %v163, 0
      %511 = vmatprep.subr.mxu0 0.0
      %512 = vmatpush1.msra.mxu0 0.0
      %513 = vmatprep.subr.mxu0 0.0
      %514 = vmatpush1.msra.mxu0 0.0
      %515 = vmatprep.subr.mxu0 0.0
      %516 = vmatpush1.msra.mxu0 0.0
      %517 = vmatprep.subr.mxu0 0.0
      %518 = vmatpush1.msra.mxu0 0.0
      %519 = vmatprep.subr.mxu0 0.0
      %520 = vmatpush1.msra.mxu0 0.0
      %521 = vmatprep.subr.mxu0 0.0
      %522 = vmatpush1.msra.mxu0 0.0
      %523 = vmatprep.subr.mxu0 0.0
      %524 = vmatpush1.msra.mxu0 0.0
      %525 = vmatprep.subr.mxu0 0.0
      %526 = vmatpush1.msra.mxu0 0.0
      %527 = vmatprep.subr.mxu0 0.0
      %528 = vmatpush1.msra.mxu0 0.0
      %529 = vmatprep.subr.mxu0 0.0
      %530 = vmatpush1.msra.mxu0 0.0
      %531 = vmatprep.subr.mxu0 0.0
      %532 = vmatpush1.msra.mxu0 0.0
      %533 = vmatprep.subr.mxu0 0.0
      %534 = vmatpush1.msra.mxu0 0.0
      %535 = vmatprep.subr.mxu0 0.0
      %536 = vmatpush1.msra.mxu0 0.0
      %537 = vmatprep.subr.mxu0 0.0
      %538 = vmatpush1.msra.mxu0 0.0
      %539 = vmatprep.subr.mxu0 0.0
      %540 = vmatpush1.msra.mxu0 0.0
      %541 = vmatprep.subr.mxu0 0.0
      %542 = vmatpush1.msra.mxu0 %v504
      %543 = vmatprep.subr.mxu0 0.0
      %544 = vmatpush2.msra.mxu0 0.0
      %545 = vmatprep.subr.mxu0 0.0
      %546 = vmatpush2.msra.mxu0 0.0
      %547 = vmatprep.subr.mxu0 0.0
      %548 = vmatpush2.msra.mxu0 0.0
      %549 = vmatprep.subr.mxu0 0.0
      %550 = vmatpush2.msra.mxu0 0.0
      %551 = vmatprep.subr.mxu0 0.0
      %552 = vmatpush2.msra.mxu0 0.0
      %553 = vmatprep.subr.mxu0 0.0
      %554 = vmatpush2.msra.mxu0 0.0
      %555 = vmatprep.subr.mxu0 0.0
      %556 = vmatpush2.msra.mxu0 0.0
      %557 = vmatprep.subr.mxu0 0.0
      %558 = vmatpush2.msra.mxu0 0.0
      %559 = vmatprep.subr.mxu0 0.0
      %560 = vmatpush2.msra.mxu0 0.0
      %561 = vmatprep.subr.mxu0 0.0
      %562 = vmatpush2.msra.mxu0 0.0
      %563 = vmatprep.subr.mxu0 0.0
      %564 = vmatpush2.msra.mxu0 0.0
      %565 = vmatprep.subr.mxu0 0.0
      %566 = vmatpush2.msra.mxu0 0.0
      %567 = vmatprep.subr.mxu0 0.0
      %568 = vmatpush2.msra.mxu0 0.0
      %569 = vmatprep.subr.mxu0 0.0
      %570 = vmatpush2.msra.mxu0 0.0
      %571 = vmatprep.subr.mxu0 0.0
      %572 = vmatpush2.msra.mxu0 0.0
      %573 = vmatprep.subr.mxu0 0.0
      %574 = vmatpush2.msra.mxu0 0.0
      %575 = vmatprep.mubr.f32.mxu0 0.0
      %576 = vmatmul.mubr.f32.gmra.mxu0 %v509
      %v577 = vpop.f32.mrf.mxu0
      %v578 = vadd.f32 0.0, %v577
      %v579 = vpop.f32.mrf.mxu0
      %580 = vdwg.mxu0
      %v582 = vsel %vm285, %v578, 0
      %584 = vmatprep.subr.mxu0 0.0
      %585 = vmatpush1.msra.mxu0 0.0
      %586 = vmatprep.subr.mxu0 0.0
      %587 = vmatpush1.msra.mxu0 0.0
      %588 = vmatprep.subr.mxu0 0.0
      %589 = vmatpush1.msra.mxu0 0.0
      %590 = vmatprep.subr.mxu0 0.0
      %591 = vmatpush1.msra.mxu0 0.0
      %592 = vmatprep.subr.mxu0 0.0
      %593 = vmatpush1.msra.mxu0 0.0
      %594 = vmatprep.subr.mxu0 0.0
      %595 = vmatpush1.msra.mxu0 0.0
      %596 = vmatprep.subr.mxu0 0.0
      %597 = vmatpush1.msra.mxu0 0.0
      %598 = vmatprep.subr.mxu0 0.0
      %599 = vmatpush1.msra.mxu0 0.0
      %600 = vmatprep.subr.mxu0 0.0
      %601 = vmatpush1.msra.mxu0 0.0
      %602 = vmatprep.subr.mxu0 0.0
      %603 = vmatpush1.msra.mxu0 0.0
      %604 = vmatprep.subr.mxu0 0.0
      %605 = vmatpush1.msra.mxu0 0.0
      %606 = vmatprep.subr.mxu0 0.0
      %607 = vmatpush1.msra.mxu0 0.0
      %608 = vmatprep.subr.mxu0 0.0
      %609 = vmatpush1.msra.mxu0 %v242
      %610 = vmatprep.subr.mxu0 0.0
      %611 = vmatpush1.msra.mxu0 %v241
      %612 = vmatprep.subr.mxu0 0.0
      %613 = vmatpush1.msra.mxu0 %v240
      %614 = vmatprep.subr.mxu0 0.0
      %615 = vmatpush1.msra.mxu0 %v239
      %616 = vmatprep.subr.mxu0 0.0
      %617 = vmatpush2.msra.mxu0 0.0
      %618 = vmatprep.subr.mxu0 0.0
      %619 = vmatpush2.msra.mxu0 0.0
      %620 = vmatprep.subr.mxu0 0.0
      %621 = vmatpush2.msra.mxu0 0.0
      %622 = vmatprep.subr.mxu0 0.0
      %623 = vmatpush2.msra.mxu0 0.0
      %624 = vmatprep.subr.mxu0 0.0
      %625 = vmatpush2.msra.mxu0 0.0
      %626 = vmatprep.subr.mxu0 0.0
      %627 = vmatpush2.msra.mxu0 0.0
      %628 = vmatprep.subr.mxu0 0.0
      %629 = vmatpush2.msra.mxu0 0.0
      %630 = vmatprep.subr.mxu0 0.0
      %631 = vmatpush2.msra.mxu0 0.0
      %632 = vmatprep.subr.mxu0 0.0
      %633 = vmatpush2.msra.mxu0 0.0
      %634 = vmatprep.subr.mxu0 0.0
      %635 = vmatpush2.msra.mxu0 0.0
      %636 = vmatprep.subr.mxu0 0.0
      %637 = vmatpush2.msra.mxu0 0.0
      %638 = vmatprep.subr.mxu0 0.0
      %639 = vmatpush2.msra.mxu0 0.0
      %640 = vmatprep.subr.mxu0 0.0
      %641 = vmatpush2.msra.mxu0 0.0
      %642 = vmatprep.subr.mxu0 0.0
      %643 = vmatpush2.msra.mxu0 0.0
      %644 = vmatprep.subr.mxu0 0.0
      %645 = vmatpush2.msra.mxu0 0.0
      %646 = vmatprep.subr.mxu0 0.0
      %647 = vmatpush2.msra.mxu0 0.0
      %648 = vmatprep.mubr.f32.mxu0 0.0
      %649 = vmatmul.mubr.f32.gmra.mxu0 %v582
      %v650 = vpop.f32.mrf.mxu0
      %v651 = vadd.f32 0.0, %v650
      %v652 = vpop.f32.mrf.mxu0
      %653 = vdwg.mxu0
      %v654 = vadd.f32 %v252, %v651
      %v656 = vsel %vm285, %v283, 0
      %658 = vmatprep.subr.mxu0 0.0
      %659 = vmatpush1.msra.mxu0 0.0
      %660 = vmatprep.subr.mxu0 0.0
      %661 = vmatpush1.msra.mxu0 0.0
      %662 = vmatprep.subr.mxu0 0.0
      %663 = vmatpush1.msra.mxu0 0.0
      %664 = vmatprep.subr.mxu0 0.0
      %665 = vmatpush1.msra.mxu0 0.0
      %666 = vmatprep.subr.mxu0 0.0
      %667 = vmatpush1.msra.mxu0 0.0
      %668 = vmatprep.subr.mxu0 0.0
      %669 = vmatpush1.msra.mxu0 0.0
      %670 = vmatprep.subr.mxu0 0.0
      %671 = vmatpush1.msra.mxu0 0.0
      %672 = vmatprep.subr.mxu0 0.0
      %673 = vmatpush1.msra.mxu0 0.0
      %674 = vmatprep.subr.mxu0 0.0
      %675 = vmatpush1.msra.mxu0 0.0
      %676 = vmatprep.subr.mxu0 0.0
      %677 = vmatpush1.msra.mxu0 0.0
      %678 = vmatprep.subr.mxu0 0.0
      %679 = vmatpush1.msra.mxu0 0.0
      %680 = vmatprep.subr.mxu0 0.0
      %681 = vmatpush1.msra.mxu0 0.0
      %682 = vmatprep.subr.mxu0 0.0
      %683 = vmatpush1.msra.mxu0 %v246
      %684 = vmatprep.subr.mxu0 0.0
      %685 = vmatpush1.msra.mxu0 %v245
      %686 = vmatprep.subr.mxu0 0.0
      %687 = vmatpush1.msra.mxu0 %v244
      %688 = vmatprep.subr.mxu0 0.0
      %689 = vmatpush1.msra.mxu0 %v243
      %690 = vmatprep.subr.mxu0 0.0
      %691 = vmatpush2.msra.mxu0 0.0
      %692 = vmatprep.subr.mxu0 0.0
      %693 = vmatpush2.msra.mxu0 0.0
      %694 = vmatprep.subr.mxu0 0.0
      %695 = vmatpush2.msra.mxu0 0.0
      %696 = vmatprep.subr.mxu0 0.0
      %697 = vmatpush2.msra.mxu0 0.0
      %698 = vmatprep.subr.mxu0 0.0
      %699 = vmatpush2.msra.mxu0 0.0
      %700 = vmatprep.subr.mxu0 0.0
      %701 = vmatpush2.msra.mxu0 0.0
      %702 = vmatprep.subr.mxu0 0.0
      %703 = vmatpush2.msra.mxu0 0.0
      %704 = vmatprep.subr.mxu0 0.0
      %705 = vmatpush2.msra.mxu0 0.0
      %706 = vmatprep.subr.mxu0 0.0
      %707 = vmatpush2.msra.mxu0 0.0
      %708 = vmatprep.subr.mxu0 0.0
      %709 = vmatpush2.msra.mxu0 0.0
      %710 = vmatprep.subr.mxu0 0.0
      %711 = vmatpush2.msra.mxu0 0.0
      %712 = vmatprep.subr.mxu0 0.0
      %713 = vmatpush2.msra.mxu0 0.0
      %714 = vmatprep.subr.mxu0 0.0
      %715 = vmatpush2.msra.mxu0 0.0
      %716 = vmatprep.subr.mxu0 0.0
      %717 = vmatpush2.msra.mxu0 0.0
      %718 = vmatprep.subr.mxu0 0.0
      %719 = vmatpush2.msra.mxu0 0.0
      %720 = vmatprep.subr.mxu0 0.0
      %721 = vmatpush2.msra.mxu0 0.0
      %722 = vmatprep.mubr.f32.mxu0 0.0
      %723 = vmatmul.mubr.f32.gmra.mxu0 %v656
      %v724 = vpop.f32.mrf.mxu0
      %v725 = vadd.f32 0.0, %v724
      %v726 = vpop.f32.mrf.mxu0
      %727 = vdwg.mxu0
      %v728 = vadd.f32 %v654, %v725
      %v729 = vxor.u32 %v728, 2147483648
      %v730 = vmul.f32 %v729, 1.442695
      %v731 = vpow.pop %v730
      %v732 = vadd.f32 %v731, 1.0
      %v733 = vrcp.pop %v732
      %v734 = vmul.f32 1.0, %v733
      %v735 = vmul.f32 %v734, %v284
      %v736 = vtanh.pop %v728
      %738 = vrot.lane.b32.xlu0 %v736, 64
      %v739 = vpop.permute.xlu0 %738
      %v741 = vmul.f32 %v734, %v739
      %743 = vrot.lane.b32.xlu0 %v741, 32
      %v744 = vpop.permute.xlu0 %743
      %v746 = vadd.f32 %v735, %v744
      %v747 = vtanh.pop %v746
      %749 = vrot.lane.b32.xlu0 %v747, 64
      %v750 = vpop.permute.xlu0 %749
      %v752 = vmul.f32 %v734, %v750
      %754 = vrot.lane.b32.xlu0 %v752, 32
      %v755 = vpop.permute.xlu0 %754
      %v756 = vsel %vm285, %v755, 0
      %758 = vmatprep.subr.mxu0 0.0
      %759 = vmatpush1.msra.mxu0 0.0
      %760 = vmatprep.subr.mxu0 0.0
      %761 = vmatpush1.msra.mxu0 0.0
      %762 = vmatprep.subr.mxu0 0.0
      %763 = vmatpush1.msra.mxu0 0.0
      %764 = vmatprep.subr.mxu0 0.0
      %765 = vmatpush1.msra.mxu0 0.0
      %766 = vmatprep.subr.mxu0 0.0
      %767 = vmatpush1.msra.mxu0 0.0
      %768 = vmatprep.subr.mxu0 0.0
      %769 = vmatpush1.msra.mxu0 0.0
      %770 = vmatprep.subr.mxu0 0.0
      %771 = vmatpush1.msra.mxu0 0.0
      %772 = vmatprep.subr.mxu0 0.0
      %773 = vmatpush1.msra.mxu0 0.0
      %774 = vmatprep.subr.mxu0 0.0
      %775 = vmatpush1.msra.mxu0 0.0
      %776 = vmatprep.subr.mxu0 0.0
      %777 = vmatpush1.msra.mxu0 0.0
      %778 = vmatprep.subr.mxu0 0.0
      %779 = vmatpush1.msra.mxu0 0.0
      %780 = vmatprep.subr.mxu0 0.0
      %781 = vmatpush1.msra.mxu0 0.0
      %782 = vmatprep.subr.mxu0 0.0
      %783 = vmatpush1.msra.mxu0 %v182
      %784 = vmatprep.subr.mxu0 0.0
      %785 = vmatpush1.msra.mxu0 %v181
      %786 = vmatprep.subr.mxu0 0.0
      %787 = vmatpush1.msra.mxu0 %v180
      %788 = vmatprep.subr.mxu0 0.0
      %789 = vmatpush1.msra.mxu0 %v179
      %790 = vmatprep.subr.mxu0 0.0
      %791 = vmatpush2.msra.mxu0 0.0
      %792 = vmatprep.subr.mxu0 0.0
      %793 = vmatpush2.msra.mxu0 0.0
      %794 = vmatprep.subr.mxu0 0.0
      %795 = vmatpush2.msra.mxu0 0.0
      %796 = vmatprep.subr.mxu0 0.0
      %797 = vmatpush2.msra.mxu0 0.0
      %798 = vmatprep.subr.mxu0 0.0
      %799 = vmatpush2.msra.mxu0 0.0
      %800 = vmatprep.subr.mxu0 0.0
      %801 = vmatpush2.msra.mxu0 0.0
      %802 = vmatprep.subr.mxu0 0.0
      %803 = vmatpush2.msra.mxu0 0.0
      %804 = vmatprep.subr.mxu0 0.0
      %805 = vmatpush2.msra.mxu0 0.0
      %806 = vmatprep.subr.mxu0 0.0
      %807 = vmatpush2.msra.mxu0 0.0
      %808 = vmatprep.subr.mxu0 0.0
      %809 = vmatpush2.msra.mxu0 0.0
      %810 = vmatprep.subr.mxu0 0.0
      %811 = vmatpush2.msra.mxu0 0.0
      %812 = vmatprep.subr.mxu0 0.0
      %813 = vmatpush2.msra.mxu0 0.0
      %814 = vmatprep.subr.mxu0 0.0
      %815 = vmatpush2.msra.mxu0 0.0
      %816 = vmatprep.subr.mxu0 0.0
      %817 = vmatpush2.msra.mxu0 0.0
      %818 = vmatprep.subr.mxu0 0.0
      %819 = vmatpush2.msra.mxu0 0.0
      %820 = vmatprep.subr.mxu0 0.0
      %821 = vmatpush2.msra.mxu0 0.0
      %822 = vmatprep.mubr.f32.mxu0 0.0
      %823 = vmatmul.mubr.f32.gmra.mxu0 %v756
      %v824 = vpop.f32.mrf.mxu0
      %v825 = vadd.f32 %v221, %v824
      %v826 = vpop.f32.mrf.mxu0
      %827 = vdwg.mxu0
      %v828 = vmax.f32 %v825, 0.0
      %v830 = vsel %vm285, %v828, 0
      %832 = vmatprep.subr.mxu0 0.0
      %833 = vmatpush1.msra.mxu0 0.0
      %834 = vmatprep.subr.mxu0 0.0
      %835 = vmatpush1.msra.mxu0 0.0
      %836 = vmatprep.subr.mxu0 0.0
      %837 = vmatpush1.msra.mxu0 0.0
      %838 = vmatprep.subr.mxu0 0.0
      %839 = vmatpush1.msra.mxu0 0.0
      %840 = vmatprep.subr.mxu0 0.0
      %841 = vmatpush1.msra.mxu0 0.0
      %842 = vmatprep.subr.mxu0 0.0
      %843 = vmatpush1.msra.mxu0 0.0
      %844 = vmatprep.subr.mxu0 0.0
      %845 = vmatpush1.msra.mxu0 0.0
      %846 = vmatprep.subr.mxu0 0.0
      %847 = vmatpush1.msra.mxu0 0.0
      %848 = vmatprep.subr.mxu0 0.0
      %849 = vmatpush1.msra.mxu0 0.0
      %850 = vmatprep.subr.mxu0 0.0
      %851 = vmatpush1.msra.mxu0 0.0
      %852 = vmatprep.subr.mxu0 0.0
      %853 = vmatpush1.msra.mxu0 0.0
      %854 = vmatprep.subr.mxu0 0.0
      %855 = vmatpush1.msra.mxu0 0.0
      %856 = vmatprep.subr.mxu0 0.0
      %857 = vmatpush1.msra.mxu0 %v187
      %858 = vmatprep.subr.mxu0 0.0
      %859 = vmatpush1.msra.mxu0 %v186
      %860 = vmatprep.subr.mxu0 0.0
      %861 = vmatpush1.msra.mxu0 %v185
      %862 = vmatprep.subr.mxu0 0.0
      %863 = vmatpush1.msra.mxu0 %v184
      %864 = vmatprep.subr.mxu0 0.0
      %865 = vmatpush2.msra.mxu0 0.0
      %866 = vmatprep.subr.mxu0 0.0
      %867 = vmatpush2.msra.mxu0 0.0
      %868 = vmatprep.subr.mxu0 0.0
      %869 = vmatpush2.msra.mxu0 0.0
      %870 = vmatprep.subr.mxu0 0.0
      %871 = vmatpush2.msra.mxu0 0.0
      %872 = vmatprep.subr.mxu0 0.0
      %873 = vmatpush2.msra.mxu0 0.0
      %874 = vmatprep.subr.mxu0 0.0
      %875 = vmatpush2.msra.mxu0 0.0
      %876 = vmatprep.subr.mxu0 0.0
      %877 = vmatpush2.msra.mxu0 0.0
      %878 = vmatprep.subr.mxu0 0.0
      %879 = vmatpush2.msra.mxu0 0.0
      %880 = vmatprep.subr.mxu0 0.0
      %881 = vmatpush2.msra.mxu0 0.0
      %882 = vmatprep.subr.mxu0 0.0
      %883 = vmatpush2.msra.mxu0 0.0
      %884 = vmatprep.subr.mxu0 0.0
      %885 = vmatpush2.msra.mxu0 0.0
      %886 = vmatprep.subr.mxu0 0.0
      %887 = vmatpush2.msra.mxu0 0.0
      %888 = vmatprep.subr.mxu0 0.0
      %889 = vmatpush2.msra.mxu0 0.0
      %890 = vmatprep.subr.mxu0 0.0
      %891 = vmatpush2.msra.mxu0 0.0
      %892 = vmatprep.subr.mxu0 0.0
      %893 = vmatpush2.msra.mxu0 0.0
      %894 = vmatprep.subr.mxu0 0.0
      %895 = vmatpush2.msra.mxu0 0.0
      %896 = vmatprep.mubr.f32.mxu0 0.0
      %897 = vmatmul.mubr.f32.gmra.mxu0 %v830
      %v898 = vpop.f32.mrf.mxu0
      %v899 = vadd.f32 %v229, %v898
      %v900 = vpop.f32.mrf.mxu0
      %901 = vdwg.mxu0
      %v902 = vmax.f32 %v899, 0.0
      %v904 = vsel %vm285, %v902, 0
      %906 = vmatprep.subr.mxu0 0.0
      %907 = vmatpush1.msra.mxu0 0.0
      %908 = vmatprep.subr.mxu0 0.0
      %909 = vmatpush1.msra.mxu0 0.0
      %910 = vmatprep.subr.mxu0 0.0
      %911 = vmatpush1.msra.mxu0 0.0
      %912 = vmatprep.subr.mxu0 0.0
      %913 = vmatpush1.msra.mxu0 0.0
      %914 = vmatprep.subr.mxu0 0.0
      %915 = vmatpush1.msra.mxu0 0.0
      %916 = vmatprep.subr.mxu0 0.0
      %917 = vmatpush1.msra.mxu0 0.0
      %918 = vmatprep.subr.mxu0 0.0
      %919 = vmatpush1.msra.mxu0 0.0
      %920 = vmatprep.subr.mxu0 0.0
      %921 = vmatpush1.msra.mxu0 0.0
      %922 = vmatprep.subr.mxu0 0.0
      %923 = vmatpush1.msra.mxu0 0.0
      %924 = vmatprep.subr.mxu0 0.0
      %925 = vmatpush1.msra.mxu0 0.0
      %926 = vmatprep.subr.mxu0 0.0
      %927 = vmatpush1.msra.mxu0 0.0
      %928 = vmatprep.subr.mxu0 0.0
      %929 = vmatpush1.msra.mxu0 0.0
      %930 = vmatprep.subr.mxu0 0.0
      %931 = vmatpush1.msra.mxu0 %v192
      %932 = vmatprep.subr.mxu0 0.0
      %933 = vmatpush1.msra.mxu0 %v191
      %934 = vmatprep.subr.mxu0 0.0
      %935 = vmatpush1.msra.mxu0 %v190
      %936 = vmatprep.subr.mxu0 0.0
      %937 = vmatpush1.msra.mxu0 %v189
      %938 = vmatprep.subr.mxu0 0.0
      %939 = vmatpush2.msra.mxu0 0.0
      %940 = vmatprep.subr.mxu0 0.0
      %941 = vmatpush2.msra.mxu0 0.0
      %942 = vmatprep.subr.mxu0 0.0
      %943 = vmatpush2.msra.mxu0 0.0
      %944 = vmatprep.subr.mxu0 0.0
      %945 = vmatpush2.msra.mxu0 0.0
      %946 = vmatprep.subr.mxu0 0.0
      %947 = vmatpush2.msra.mxu0 0.0
      %948 = vmatprep.subr.mxu0 0.0
      %949 = vmatpush2.msra.mxu0 0.0
      %950 = vmatprep.subr.mxu0 0.0
      %951 = vmatpush2.msra.mxu0 0.0
      %952 = vmatprep.subr.mxu0 0.0
      %953 = vmatpush2.msra.mxu0 0.0
      %954 = vmatprep.subr.mxu0 0.0
      %955 = vmatpush2.msra.mxu0 0.0
      %956 = vmatprep.subr.mxu0 0.0
      %957 = vmatpush2.msra.mxu0 0.0
      %958 = vmatprep.subr.mxu0 0.0
      %959 = vmatpush2.msra.mxu0 0.0
      %960 = vmatprep.subr.mxu0 0.0
      %961 = vmatpush2.msra.mxu0 0.0
      %962 = vmatprep.subr.mxu0 0.0
      %963 = vmatpush2.msra.mxu0 0.0
      %964 = vmatprep.subr.mxu0 0.0
      %965 = vmatpush2.msra.mxu0 0.0
      %966 = vmatprep.subr.mxu0 0.0
      %967 = vmatpush2.msra.mxu0 0.0
      %968 = vmatprep.subr.mxu0 0.0
      %969 = vmatpush2.msra.mxu0 0.0
      %970 = vmatprep.mubr.f32.mxu0 0.0
      %971 = vmatmul.mubr.f32.gmra.mxu0 %v904
      %v972 = vpop.f32.mrf.mxu0
      %v973 = vadd.f32 %v237, %v972
      %v974 = vpop.f32.mrf.mxu0
      %975 = vdwg.mxu0
      %v977 = vsel %vm507, %v164, 0
      %979 = vmatprep.subr.mxu0 0.0
      %980 = vmatpush1.msra.mxu0 0.0
      %981 = vmatprep.subr.mxu0 0.0
      %982 = vmatpush1.msra.mxu0 0.0
      %983 = vmatprep.subr.mxu0 0.0
      %984 = vmatpush1.msra.mxu0 0.0
      %985 = vmatprep.subr.mxu0 0.0
      %986 = vmatpush1.msra.mxu0 0.0
      %987 = vmatprep.subr.mxu0 0.0
      %988 = vmatpush1.msra.mxu0 0.0
      %989 = vmatprep.subr.mxu0 0.0
      %990 = vmatpush1.msra.mxu0 0.0
      %991 = vmatprep.subr.mxu0 0.0
      %992 = vmatpush1.msra.mxu0 0.0
      %993 = vmatprep.subr.mxu0 0.0
      %994 = vmatpush1.msra.mxu0 0.0
      %995 = vmatprep.subr.mxu0 0.0
      %996 = vmatpush1.msra.mxu0 0.0
      %997 = vmatprep.subr.mxu0 0.0
      %998 = vmatpush1.msra.mxu0 0.0
      %999 = vmatprep.subr.mxu0 0.0
      %1000 = vmatpush1.msra.mxu0 0.0
      %1001 = vmatprep.subr.mxu0 0.0
      %1002 = vmatpush1.msra.mxu0 0.0
      %1003 = vmatprep.subr.mxu0 0.0
      %1004 = vmatpush1.msra.mxu0 0.0
      %1005 = vmatprep.subr.mxu0 0.0
      %1006 = vmatpush1.msra.mxu0 0.0
      %1007 = vmatprep.subr.mxu0 0.0
      %1008 = vmatpush1.msra.mxu0 0.0
      %1009 = vmatprep.subr.mxu0 0.0
      %1010 = vmatpush1.msra.mxu0 %v973
      %1011 = vmatprep.subr.mxu0 0.0
      %1012 = vmatpush2.msra.mxu0 0.0
      %1013 = vmatprep.subr.mxu0 0.0
      %1014 = vmatpush2.msra.mxu0 0.0
      %1015 = vmatprep.subr.mxu0 0.0
      %1016 = vmatpush2.msra.mxu0 0.0
      %1017 = vmatprep.subr.mxu0 0.0
      %1018 = vmatpush2.msra.mxu0 0.0
      %1019 = vmatprep.subr.mxu0 0.0
      %1020 = vmatpush2.msra.mxu0 0.0
      %1021 = vmatprep.subr.mxu0 0.0
      %1022 = vmatpush2.msra.mxu0 0.0
      %1023 = vmatprep.subr.mxu0 0.0
      %1024 = vmatpush2.msra.mxu0 0.0
      %1025 = vmatprep.subr.mxu0 0.0
      %1026 = vmatpush2.msra.mxu0 0.0
      %1027 = vmatprep.subr.mxu0 0.0
      %1028 = vmatpush2.msra.mxu0 0.0
      %1029 = vmatprep.subr.mxu0 0.0
      %1030 = vmatpush2.msra.mxu0 0.0
      %1031 = vmatprep.subr.mxu0 0.0
      %1032 = vmatpush2.msra.mxu0 0.0
      %1033 = vmatprep.subr.mxu0 0.0
      %1034 = vmatpush2.msra.mxu0 0.0
      %1035 = vmatprep.subr.mxu0 0.0
      %1036 = vmatpush2.msra.mxu0 0.0
      %1037 = vmatprep.subr.mxu0 0.0
      %1038 = vmatpush2.msra.mxu0 0.0
      %1039 = vmatprep.subr.mxu0 0.0
      %1040 = vmatpush2.msra.mxu0 0.0
      %1041 = vmatprep.subr.mxu0 0.0
      %1042 = vmatpush2.msra.mxu0 0.0
      %1043 = vmatprep.mubr.f32.mxu0 0.0
      %1044 = vmatmul.mubr.f32.gmra.mxu0 %v977
      %v1045 = vpop.f32.mrf.mxu0
      %v1046 = vadd.f32 0.0, %v1045
      %v1047 = vpop.f32.mrf.mxu0
      %1048 = vdwg.mxu0
      %1049 = vmatprep.subr.mxu0 0.0
      %1050 = vmatpush1.msra.mxu0 0.0
      %1051 = vmatprep.subr.mxu0 0.0
      %1052 = vmatpush1.msra.mxu0 0.0
      %1053 = vmatprep.subr.mxu0 0.0
      %1054 = vmatpush1.msra.mxu0 0.0
      %1055 = vmatprep.subr.mxu0 0.0
      %1056 = vmatpush1.msra.mxu0 0.0
      %1057 = vmatprep.subr.mxu0 0.0
      %1058 = vmatpush1.msra.mxu0 0.0
      %1059 = vmatprep.subr.mxu0 0.0
      %1060 = vmatpush1.msra.mxu0 0.0
      %1061 = vmatprep.subr.mxu0 0.0
      %1062 = vmatpush1.msra.mxu0 0.0
      %1063 = vmatprep.subr.mxu0 0.0
      %1064 = vmatpush1.msra.mxu0 0.0
      %1065 = vmatprep.subr.mxu0 0.0
      %1066 = vmatpush1.msra.mxu0 0.0
      %1067 = vmatprep.subr.mxu0 0.0
      %1068 = vmatpush1.msra.mxu0 0.0
      %1069 = vmatprep.subr.mxu0 0.0
      %1070 = vmatpush1.msra.mxu0 0.0
      %1071 = vmatprep.subr.mxu0 0.0
      %1072 = vmatpush1.msra.mxu0 0.0
      %1073 = vmatprep.subr.mxu0 %v265
      %1074 = vmatpush1.msra.mxu0 %v264
      %1075 = vmatprep.subr.mxu0 %v263
      %1076 = vmatpush1.msra.mxu0 %v262
      %1077 = vmatprep.subr.mxu0 %v261
      %1078 = vmatpush1.msra.mxu0 %v260
      %1079 = vmatprep.subr.mxu0 %v259
      %1080 = vmatpush1.msra.mxu0 %v258
      %1081 = vmatprep.subr.mxu0 0.0
      %1082 = vmatpush2.msra.mxu0 0.0
      %1083 = vmatprep.subr.mxu0 0.0
      %1084 = vmatpush2.msra.mxu0 0.0
      %1085 = vmatprep.subr.mxu0 0.0
      %1086 = vmatpush2.msra.mxu0 0.0
      %1087 = vmatprep.subr.mxu0 0.0
      %1088 = vmatpush2.msra.mxu0 0.0
      %1089 = vmatprep.subr.mxu0 0.0
      %1090 = vmatpush2.msra.mxu0 0.0
      %1091 = vmatprep.subr.mxu0 0.0
      %1092 = vmatpush2.msra.mxu0 0.0
      %1093 = vmatprep.subr.mxu0 0.0
      %1094 = vmatpush2.msra.mxu0 0.0
      %1095 = vmatprep.subr.mxu0 0.0
      %1096 = vmatpush2.msra.mxu0 0.0
      %1097 = vmatprep.subr.mxu0 0.0
      %1098 = vmatpush2.msra.mxu0 0.0
      %1099 = vmatprep.subr.mxu0 0.0
      %1100 = vmatpush2.msra.mxu0 0.0
      %1101 = vmatprep.subr.mxu0 0.0
      %1102 = vmatpush2.msra.mxu0 0.0
      %1103 = vmatprep.subr.mxu0 0.0
      %1104 = vmatpush2.msra.mxu0 0.0
      %1105 = vmatprep.subr.mxu0 0.0
      %1106 = vmatpush2.msra.mxu0 0.0
      %1107 = vmatprep.subr.mxu0 0.0
      %1108 = vmatpush2.msra.mxu0 0.0
      %1109 = vmatprep.subr.mxu0 0.0
      %1110 = vmatpush2.msra.mxu0 0.0
      %1111 = vmatprep.subr.mxu0 0.0
      %1112 = vmatpush2.msra.mxu0 0.0
      %1113 = vmatprep.mubr.f32.mxu0 0.0
      %1114 = vmatmul.mubr.f32.gmra.mxu0 %v287
      %v1115 = vpop.f32.mrf.mxu0
      %v1116 = vadd.f32 0.0, %v1115
      %v1117 = vpop.f32.mrf.mxu0
      %v1118 = vadd.f32 0.0, %v1117
      %1119 = vdwg.mxu0
      %v1121 = vrot.slane %v1116, 4
      %vm1123 = vcmask 1043456
      %v1124 = vsel %vm1123, %v1121, %v1121
      %v1125 = vadd.f32 %v271, %v1124
      %v1126 = vadd.f32 %v1125, %v1118
      %v1128 = vsel %vm285, %v1046, 0
      %1130 = vmatprep.subr.mxu0 0.0
      %1131 = vmatpush1.msra.mxu0 0.0
      %1132 = vmatprep.subr.mxu0 0.0
      %1133 = vmatpush1.msra.mxu0 0.0
      %1134 = vmatprep.subr.mxu0 0.0
      %1135 = vmatpush1.msra.mxu0 0.0
      %1136 = vmatprep.subr.mxu0 0.0
      %1137 = vmatpush1.msra.mxu0 0.0
      %1138 = vmatprep.subr.mxu0 0.0
      %1139 = vmatpush1.msra.mxu0 0.0
      %1140 = vmatprep.subr.mxu0 0.0
      %1141 = vmatpush1.msra.mxu0 0.0
      %1142 = vmatprep.subr.mxu0 0.0
      %1143 = vmatpush1.msra.mxu0 0.0
      %1144 = vmatprep.subr.mxu0 0.0
      %1145 = vmatpush1.msra.mxu0 0.0
      %1146 = vmatprep.subr.mxu0 0.0
      %1147 = vmatpush1.msra.mxu0 0.0
      %1148 = vmatprep.subr.mxu0 0.0
      %1149 = vmatpush1.msra.mxu0 0.0
      %1150 = vmatprep.subr.mxu0 0.0
      %1151 = vmatpush1.msra.mxu0 0.0
      %1152 = vmatprep.subr.mxu0 0.0
      %1153 = vmatpush1.msra.mxu0 0.0
      %1154 = vmatprep.subr.mxu0 0.0
      %1155 = vmatpush1.msra.mxu0 %v257
      %1156 = vmatprep.subr.mxu0 0.0
      %1157 = vmatpush1.msra.mxu0 %v256
      %1158 = vmatprep.subr.mxu0 0.0
      %1159 = vmatpush1.msra.mxu0 %v255
      %1160 = vmatprep.subr.mxu0 0.0
      %1161 = vmatpush1.msra.mxu0 %v254
      %1162 = vmatprep.subr.mxu0 0.0
      %1163 = vmatpush2.msra.mxu0 0.0
      %1164 = vmatprep.subr.mxu0 0.0
      %1165 = vmatpush2.msra.mxu0 0.0
      %1166 = vmatprep.subr.mxu0 0.0
      %1167 = vmatpush2.msra.mxu0 0.0
      %1168 = vmatprep.subr.mxu0 0.0
      %1169 = vmatpush2.msra.mxu0 0.0
      %1170 = vmatprep.subr.mxu0 0.0
      %1171 = vmatpush2.msra.mxu0 0.0
      %1172 = vmatprep.subr.mxu0 0.0
      %1173 = vmatpush2.msra.mxu0 0.0
      %1174 = vmatprep.subr.mxu0 0.0
      %1175 = vmatpush2.msra.mxu0 0.0
      %1176 = vmatprep.subr.mxu0 0.0
      %1177 = vmatpush2.msra.mxu0 0.0
      %1178 = vmatprep.subr.mxu0 0.0
      %1179 = vmatpush2.msra.mxu0 0.0
      %1180 = vmatprep.subr.mxu0 0.0
      %1181 = vmatpush2.msra.mxu0 0.0
      %1182 = vmatprep.subr.mxu0 0.0
      %1183 = vmatpush2.msra.mxu0 0.0
      %1184 = vmatprep.subr.mxu0 0.0
      %1185 = vmatpush2.msra.mxu0 0.0
      %1186 = vmatprep.subr.mxu0 0.0
      %1187 = vmatpush2.msra.mxu0 0.0
      %1188 = vmatprep.subr.mxu0 0.0
      %1189 = vmatpush2.msra.mxu0 0.0
      %1190 = vmatprep.subr.mxu0 0.0
      %1191 = vmatpush2.msra.mxu0 0.0
      %1192 = vmatprep.subr.mxu0 0.0
      %1193 = vmatpush2.msra.mxu0 0.0
      %1194 = vmatprep.mubr.f32.mxu0 0.0
      %1195 = vmatmul.mubr.f32.gmra.mxu0 %v1128
      %v1196 = vpop.f32.mrf.mxu0
      %v1197 = vadd.f32 0.0, %v1196
      %v1198 = vpop.f32.mrf.mxu0
      %1199 = vdwg.mxu0
      %v1200 = vadd.f32 %v1126, %v1197
      %v1201 = vxor.u32 %v1200, 2147483648
      %v1202 = vmul.f32 %v1201, 1.442695
      %v1203 = vpow.pop %v1202
      %v1204 = vadd.f32 %v1203, 1.0
      %v1205 = vrcp.pop %v1204
      %v1206 = vmul.f32 1.0, %v1205
      %v1207 = vmul.f32 %v1206, %v282
      %v1208 = vtanh.pop %v1200
      %1210 = vrot.lane.b32.xlu0 %v1208, 64
      %v1211 = vpop.permute.xlu0 %1210
      %v1213 = vmul.f32 %v1206, %v1211
      %1215 = vrot.lane.b32.xlu0 %v1213, 32
      %v1216 = vpop.permute.xlu0 %1215
      %v1218 = vadd.f32 %v1207, %v1216
      %v1219 = vtanh.pop %v1218
      %1221 = vrot.lane.b32.xlu0 %v1219, 64
      %v1222 = vpop.permute.xlu0 %1221
      %v1224 = vmul.f32 %v1206, %v1222
      %1226 = vrot.lane.b32.xlu0 %v1224, 32
      %v1227 = vpop.permute.xlu0 %1226
    $region94: #{tpu_custom_call.1} parent=1 // loop_footer
      %s280 = sadd.s32 1, %s276
    $region95: #{tpu_custom_call.1} parent=1 // loop_footer_branch
      %275 = sbr.rel target = $region91
    $region96: #{tpu_custom_call.1} parent=1 // loop_exit
      _
    %vm1230 = vcmask 261120
    %1231 = vst.msk [vmem:[#allocation17] sm:$0xff] %vm1230, %v281
    %1232 = vst.msk [vmem:[#allocation17 + $0x8] sm:$0xff] %vm1230, %v283
    // Predicated region
    $region97: #{tpu_custom_call.1} parent=1 // pred_check
      _
    $region98: #{tpu_custom_call.1} parent=1 // pred_check_branch
      %1234 = sbr.rel (0) target = $region100
    $region99: #{tpu_custom_call.1} parent=1 // pred_region
      %s1236 = ssub.s32 256, 256
      %1237 = vsyncadd [#allocation4], %s1236
      %s1238 = sshll.u32 [#allocation17], 4
      %s1239 = int_to_ptr.vmem [resolvable:$true] %s1238
      %1244 = dma.vmem_to_hbm [thread:$0]  %s1239, 256, %s13, [#allocation4], 128, 128, 8
    $region100: #{tpu_custom_call.1} parent=1 // pred_fallthru
      _
    // Predicated region
    $region101: #{tpu_custom_call.1} parent=1 // pred_check
      _
    $region102: #{tpu_custom_call.1} parent=1 // pred_check_branch
      %1246 = sbr.rel (0) target = $region104
    $region103: #{tpu_custom_call.1} parent=1 // pred_region
      %1247 = dma.done [#allocation4], 256
    $region104: #{tpu_custom_call.1} parent=1 // pred_fallthru
      _
    %1248 = vsyncpa [#allocation3], 1
    %1249 = vsyncpa [#allocation6], 1
    %1250 = vsyncpa [#allocation9], 1
    %1251 = vsyncpa [#allocation12], 1
    %1252 = vsyncpa [#allocation15], 1
    %1253 = vsyncpa [#allocation4], 1

</llo_original>
